<compile_context>
chip_gen: v7x
topology: tpu7x:2x2x1
jax: 0.10.0
libtpu: 0.0.40
codegen_flags: <defaults>
</compile_context>

<pallas_src>
import jax
import jax.numpy as jnp
from jax import lax
from jax.experimental import pallas as pl
from jax.experimental.pallas import tpu as pltpu

_EPS = 1e-8            # torch cosine_similarity default eps (clamps each norm)
_EPS_SQ = _EPS * _EPS  # clamping squared norms at eps^2 == clamping norms at eps
_MAX_BLOCK_ROWS = 8192
_TRANS_RHS_DIMS = (((1,), (1,)), ((), ()))  # contract last dims of both operands


def _round_up(x, m):
    return ((x + m - 1) // m) * m


def _vmem_capacity_bytes():
    try:
        info = pltpu.get_tpu_info()
        cap = getattr(info, "vmem_capacity_bytes", None)
        if cap:
            return int(cap)
    except Exception:
        pass
    return 64 * 1024 * 1024  # conservative fallback == v7x per-core VMEM


def _cosine_sim_kernel(scale_ref, seg_ref, u_ref, v_ref, o_ref):
    """(tb, lanes) input tiles -> (r, tb) lane-dense scaled cosine similarities.

    seg_ref is an (r, lanes) 0/1 matrix selecting, for each of the r logical
    rows packed into a 128-lane row, its `feat_dim` lanes (all-ones when r==1).
    The transposed-RHS matmul puts the per-row sums directly on the lane axis,
    so the whole epilogue and the store are lane-dense.
    """
    u = u_ref[...].astype(jnp.float32)
    v = v_ref[...].astype(jnp.float32)
    seg = seg_ref[...]  # (r, lanes) float32

    dot = lax.dot_general(seg, u * v, _TRANS_RHS_DIMS,
                          precision=lax.Precision.HIGHEST,
                          preferred_element_type=jnp.float32)
    su = lax.dot_general(seg, u * u, _TRANS_RHS_DIMS,
                         precision=lax.Precision.HIGHEST,
                         preferred_element_type=jnp.float32)
    sv = lax.dot_general(seg, v * v, _TRANS_RHS_DIMS,
                         precision=lax.Precision.HIGHEST,
                         preferred_element_type=jnp.float32)

    # Single rsqrt on the EUP; clamping squared norms at eps^2 == torch's
    # per-norm eps clamp.
    inv_norms = lax.rsqrt(jnp.maximum(su, _EPS_SQ) * jnp.maximum(sv, _EPS_SQ))
    o_ref[...] = (dot * inv_norms * scale_ref[0]).astype(o_ref.dtype)


def cosine_similarity(user_emb, item_emb, temperature=1.0, block_rows=None):
    """Cosine similarity along the last dim, divided by temperature.

    user_emb, item_emb: same-shape arrays; similarity over the last dim.
    Returns float32 array of the leading (batch) shape.
    """
    assert user_emb.shape == item_emb.shape
    assert user_emb.dtype == item_emb.dtype
    lead = user_emb.shape[:-1]
    D = user_emb.shape[-1]
    u = user_emb.reshape(-1, D)
    v = item_emb.reshape(-1, D)
    B = u.shape[0]

    # Pack r = 128 // D logical rows per 128-lane row when D < 128 (full lane
    # occupancy, 128/D x smaller VMEM/HBM tile footprint).
    r = 128 // D if (D < 128 and 128 % D == 0) else 1
    lanes = D * r

    # Pad only to a multiple of r (< r rows); ragged row counts are handled by
    # the grid (cdiv + clipped edge DMA), so no padding to the tile size.
    b_pad = _round_up(max(B, 1), r)
    if b_pad != B:
        pad = ((0, b_pad - B), (0, 0))
        u = jnp.pad(u, pad)  # zero rows -> sim 0, sliced off below
        v = jnp.pad(v, pad)
    n_rows = b_pad // r
    u_packed = u.reshape(n_rows, lanes)
    v_packed = v.reshape(n_rows, lanes)

    # seg_t[j, l] = 1 where lane l belongs to logical sub-row j (all-ones if r==1).
    seg_t = (jnp.arange(lanes, dtype=jnp.int32)[None, :] // D
             == jnp.arange(r, dtype=jnp.int32)[:, None]).astype(jnp.float32)

    # Batch tile sized from the actual VMEM capacity: double-buffered inputs
    # plus full-tile f32 temporaries (casts, products, HIGHEST-precision
    # decompositions) must fit comfortably under vmem_limit_bytes.
    itemsize = jnp.dtype(u.dtype).itemsize
    lanes_padded = _round_up(lanes, 128)
    vmem_cap = _vmem_capacity_bytes()
    vmem_limit = min(vmem_cap // 2, 64 * 1024 * 1024)
    per_row = 4 * lanes_padded * itemsize + 8 * lanes_padded * 4 + 4
    if block_rows is None:
        tb = (vmem_limit * 3 // 4) // per_row
        tb = max(128, min(_MAX_BLOCK_ROWS, (tb // 128) * 128))
    else:
        tb = max(128, _round_up(block_rows, 128))
    tb = min(tb, _round_up(n_rows, 128))  # don't allocate beyond available work
    # TODO(synk): for very large lanes on v7x, an inner row-chunked reduction
    # loop would allow a larger tb at the same live-VMEM footprint.

    grid = (pl.cdiv(n_rows, tb),)
    scale = jnp.full((1,), 1.0 / temperature, dtype=jnp.float32)  # SMEM scalar

    cost = pl.CostEstimate(
        flops=9 * b_pad * D,
        transcendentals=n_rows * r,
        bytes_accessed=2 * b_pad * D * itemsize + n_rows * r * 4,
    )

    out = pl.pallas_call(
        _cosine_sim_kernel,
        out_shape=jax.ShapeDtypeStruct((r, n_rows), jnp.float32),
        grid_spec=pltpu.PrefetchScalarGridSpec(
            num_scalar_prefetch=0,
            grid=grid,
            in_specs=[
                pl.BlockSpec(memory_space=pltpu.MemorySpace.SMEM),  # 1/temperature
                pl.BlockSpec((r, lanes), lambda i: (0, 0)),          # segment matrix
                pl.BlockSpec((tb, lanes), lambda i: (i, 0)),         # user rows
                pl.BlockSpec((tb, lanes), lambda i: (i, 0)),         # item rows
            ],
            out_specs=pl.BlockSpec((r, tb), lambda i: (0, i)),       # lane-dense
        ),
        compiler_params=pltpu.CompilerParams(
            dimension_semantics=("parallel",),
            vmem_limit_bytes=vmem_limit,
        ),
        cost_estimate=cost,
    )(scale, seg_t, u_packed, v_packed)

    # (r, n_rows) -> logical row order; tiny wrapper-side transpose.
    sims = out.T.reshape(-1)[:B]
    return sims.reshape(lead)


if __name__ == "__main__":
    key = jax.random.PRNGKey(0)
    keys = jax.random.split(key, 6)

    def reference(uu, vv, temperature):
        uf = uu.astype(jnp.float32)
        vf = vv.astype(jnp.float32)
        dot = jnp.sum(uf * vf, axis=-1)
        un = jnp.maximum(jnp.linalg.norm(uf, axis=-1), _EPS)
        vn = jnp.maximum(jnp.linalg.norm(vf, axis=-1), _EPS)
        return (dot / (un * vn)) / temperature

    # Case 1: small dim (D=32 -> 4 logical rows per 128-lane row), ragged B % r.
    B1, D1, t1 = 10, 32, 0.5
    u1 = jax.random.normal(keys[0], (B1, D1), dtype=jnp.float32)
    v1 = jax.random.normal(keys[1], (B1, D1), dtype=jnp.float32)
    s1 = jax.block_until_ready(cosine_similarity(u1, v1, temperature=t1))
    assert s1.shape == (B1,)
    assert jnp.allclose(s1, reference(u1, v1, t1), atol=2e-5, rtol=2e-5)

    # Case 2: D >= 128 (no packing).
    B2, D2, t2 = 16, 256, 1.0
    u2 = jax.random.normal(keys[2], (B2, D2), dtype=jnp.float32)
    v2 = jax.random.normal(keys[3], (B2, D2), dtype=jnp.float32)
    s2 = jax.block_until_ready(cosine_similarity(u2, v2, temperature=t2))
    assert s2.shape == (B2,)
    assert jnp.allclose(s2, reference(u2, v2, t2), atol=2e-5, rtol=2e-5)

    # Case 3: multi-step grid with ragged last block (n_rows=151, tb=128 -> grid=2).
    B3, D3, t3 = 301, 64, 2.0
    u3 = jax.random.normal(keys[4], (B3, D3), dtype=jnp.float32)
    v3 = jax.random.normal(keys[5], (B3, D3), dtype=jnp.float32)
    s3 = jax.block_until_ready(
        cosine_similarity(u3, v3, temperature=t3, block_rows=128))
    assert s3.shape == (B3,)
    assert jnp.allclose(s3, reference(u3, v3, t3), atol=2e-5, rtol=2e-5)

    print("KERNEL_OK")
</pallas_src>

<mosaic_0001>
module attributes {stable_mosaic.version = 11 : i64} {
  func.func @_cosine_sim_kernel(%arg0: i32, %arg1: memref<1xf32, #tpu.memory_space<smem>>, %arg2: memref<4x128xf32, #tpu.memory_space<vmem>>, %arg3: memref<128x128xf32, #tpu.memory_space<vmem>>, %arg4: memref<128x128xf32, #tpu.memory_space<vmem>>, %arg5: memref<4x128xf32, #tpu.memory_space<vmem>>) attributes {dimension_semantics = [#tpu.dimension_semantics<parallel>], iteration_bounds = array<i64: 1>, scalar_prefetch = 0 : i64, scratch_operands = 0 : i64, tpu.core_type = #tpu.core_type<tc>, window_params = [{transform_indices = @transform_0, window_bounds = array<i64: 1>}, {pipeline_mode = #tpu.pipeline_mode<synchronous>, transform_indices = @transform_1, window_bounds = array<i64: 4, 128>}, {transform_indices = @transform_2, window_bounds = array<i64: 128, 128>}, {transform_indices = @transform_3, window_bounds = array<i64: 128, 128>}, {transform_indices = @transform_4, window_bounds = array<i64: 4, 128>}]} {
    %c0 = arith.constant 0 : index
    %c0_0 = arith.constant 0 : index
    %0 = vector.load %arg3[%c0, %c0_0] : memref<128x128xf32, #tpu.memory_space<vmem>>, vector<128x128xf32>
    %c0_1 = arith.constant 0 : index
    %c0_2 = arith.constant 0 : index
    %1 = vector.load %arg4[%c0_1, %c0_2] : memref<128x128xf32, #tpu.memory_space<vmem>>, vector<128x128xf32>
    %c0_3 = arith.constant 0 : index
    %c0_4 = arith.constant 0 : index
    %2 = vector.load %arg2[%c0_3, %c0_4] : memref<4x128xf32, #tpu.memory_space<vmem>>, vector<4x128xf32>
    %3 = arith.mulf %0, %1 : vector<128x128xf32>
    %cst = arith.constant dense<0.000000e+00> : vector<4x128xf32>
    %4 = tpu.matmul %2, %3, %cst {dimension_numbers = #tpu.dot_dimension_numbers<[1], [1], [0], [0], [0, 0, 1, 0], [], []>, precision = #tpu.contract_precision<fp32>} : vector<4x128xf32>, vector<128x128xf32>, vector<4x128xf32> -> vector<4x128xf32>
    %5 = arith.mulf %0, %0 : vector<128x128xf32>
    %cst_5 = arith.constant dense<0.000000e+00> : vector<4x128xf32>
    %6 = tpu.matmul %2, %5, %cst_5 {dimension_numbers = #tpu.dot_dimension_numbers<[1], [1], [0], [0], [0, 0, 1, 0], [], []>, precision = #tpu.contract_precision<fp32>} : vector<4x128xf32>, vector<128x128xf32>, vector<4x128xf32> -> vector<4x128xf32>
    %7 = arith.mulf %1, %1 : vector<128x128xf32>
    %cst_6 = arith.constant dense<0.000000e+00> : vector<4x128xf32>
    %8 = tpu.matmul %2, %7, %cst_6 {dimension_numbers = #tpu.dot_dimension_numbers<[1], [1], [0], [0], [0, 0, 1, 0], [], []>, precision = #tpu.contract_precision<fp32>} : vector<4x128xf32>, vector<128x128xf32>, vector<4x128xf32> -> vector<4x128xf32>
    %cst_7 = arith.constant 1.000000e-16 : f32
    %9 = vector.broadcast %cst_7 : f32 to vector<4x128xf32>
    %10 = arith.maximumf %6, %9 : vector<4x128xf32>
    %cst_8 = arith.constant 1.000000e-16 : f32
    %11 = vector.broadcast %cst_8 : f32 to vector<4x128xf32>
    %12 = arith.maximumf %8, %11 : vector<4x128xf32>
    %13 = arith.mulf %10, %12 : vector<4x128xf32>
    %14 = math.rsqrt %13 : vector<4x128xf32>
    %15 = arith.mulf %4, %14 : vector<4x128xf32>
    %c0_9 = arith.constant 0 : index
    %16 = memref.load %arg1[%c0_9] : memref<1xf32, #tpu.memory_space<smem>>
    %17 = vector.broadcast %16 : f32 to vector<4x128xf32>
    %18 = arith.mulf %15, %17 : vector<4x128xf32>
    %c0_10 = arith.constant 0 : index
    %c0_11 = arith.constant 0 : index
    %19 = vector.load %arg5[%c0_10, %c0_11] : memref<4x128xf32, #tpu.memory_space<vmem>>, vector<4x128xf32>
    tpu.vector_store %arg5[%c0_10, %c0_11], %18 {strides = array<i32>} : memref<4x128xf32, #tpu.memory_space<vmem>>, vector<4x128xf32>,
    return
  }
  func.func @transform_0(%arg0: i32) -> i32 {
    %c0_i32 = arith.constant 0 : i32
    %c0_i32_0 = arith.constant 0 : i32
    return %c0_i32 : i32
  }
  func.func @transform_1(%arg0: i32) -> (i32, i32) {
    %c0_i32 = arith.constant 0 : i32
    %c0_i32_0 = arith.constant 0 : i32
    %c0_i32_1 = arith.constant 0 : i32
    return %c0_i32, %c0_i32_0 : i32, i32
  }
  func.func @transform_2(%arg0: i32) -> (i32, i32) {
    %c0_i32 = arith.constant 0 : i32
    %c0_i32_0 = arith.constant 0 : i32
    return %arg0, %c0_i32 : i32, i32
  }
  func.func @transform_3(%arg0: i32) -> (i32, i32) {
    %c0_i32 = arith.constant 0 : i32
    %c0_i32_0 = arith.constant 0 : i32
    return %arg0, %c0_i32 : i32, i32
  }
  func.func @transform_4(%arg0: i32) -> (i32, i32) {
    %c0_i32 = arith.constant 0 : i32
    %c0_i32_0 = arith.constant 0 : i32
    return %c0_i32, %arg0 : i32, i32
  }
}

</mosaic_0001>

<llo_original>
// kernel: tpu_custom_call.1
$region0: #{tpu_custom_call.1}
  #allocation0 [shape = 'u32[]', space=smem, size = 0x4, offset = 0x4, fixed_abs, tag = 'smem constant byte address 0x4 - core index']
  #allocation1 [shape = 'u32[144,128]{1,0:T(1,128)}', space=vmem, size = 0x12000, scoped, tag = 'internal scratch']
  #allocation2 [shape = 'f32[1]{0:T(128)S(6)}', space=smem, size = 0x200, scoped, tag = 'scoped memory for tpu_custom_call.1']
  %s0 = inlined_call_operand.<no memory space> [shape: f32[1], index: 0, kind: input, shape index: {}]
  %s1 = inlined_call_operand.hbm [shape: f32[4,128], index: 1, kind: input, shape index: {}]
  %s2 = inlined_call_operand.vmem [shape: f32[3,128], index: 2, kind: input, shape index: {}]
  %s3 = inlined_call_operand.vmem [shape: f32[3,128], index: 3, kind: input, shape index: {}]
  %s4 = inlined_call_operand.hbm [shape: f32[4,3], index: 4, kind: output, shape index: {}]
  %s5 = sld [smem:[#allocation0]]
  $region30: #{tpu_custom_call.1} parent=0
    _
  %s7 = ssub.s32 1, %s5
  %s8 = scalar_select 0, %s7, %s5
  %9 = sst [smem:[#allocation2]] %s0
  $region1: #{tpu_custom_call.1} parent=0
    #allocation3 [shape = 'u8[2048]{0}', space=vmem, size = 0x800, scoped, tag = 'input window, operand 1, single buffered']
    #allocation4 [shape = 's32[1]{0}', space=sflag, size = 0x4, scoped, tag = 'scoped memory for tpu_custom_call.1']
    #allocation5 [shape = 's32[1]{0}', space=sflag, size = 0x4, scoped, tag = 'scoped memory for tpu_custom_call.1']
    #allocation6 [shape = 'u8[2048]{0}', space=vmem, size = 0x800, scoped, tag = 'output window, operand 0, single buffered']
    %10 = vsyncpa [#allocation4], 0
    %11 = vsyncpa [#allocation5], 0
    // Predicated region
    $region2: #{tpu_custom_call.1} parent=1 // pred_check
      _
    $region3: #{tpu_custom_call.1} parent=1 // pred_check_branch
      %13 = sbr.rel (0) target = $region5
    $region4: #{tpu_custom_call.1} parent=1 // pred_region
      _
    $region5: #{tpu_custom_call.1} parent=1 // pred_fallthru
      _
    // Predicated region
    $region6: #{tpu_custom_call.1} parent=1 // pred_check
      _
    $region7: #{tpu_custom_call.1} parent=1 // pred_check_branch
      %15 = sbr.rel (0) target = $region9
    $region8: #{tpu_custom_call.1} parent=1 // pred_region
      %s17 = ssub.s32 64, 64
      %18 = vsyncadd [#allocation4], %s17
      %s20 = sshll.u32 [#allocation3], 4
      %s21 = int_to_ptr.vmem [resolvable:$true] %s20
      %23 = dma.hbm_to_vmem [thread:$0]  %s1, 64, %s21, [#allocation4]
    $region9: #{tpu_custom_call.1} parent=1 // pred_fallthru
      _
    // Predicated region
    $region10: #{tpu_custom_call.1} parent=1 // pred_check
      _
    $region11: #{tpu_custom_call.1} parent=1 // pred_check_branch
      %25 = sbr.rel (0) target = $region13
    $region12: #{tpu_custom_call.1} parent=1 // pred_region
      _
    $region13: #{tpu_custom_call.1} parent=1 // pred_fallthru
      _
    // Predicated region
    $region14: #{tpu_custom_call.1} parent=1 // pred_check
      _
    $region15: #{tpu_custom_call.1} parent=1 // pred_check_branch
      %27 = sbr.rel (0) target = $region17
    $region16: #{tpu_custom_call.1} parent=1 // pred_region
      _
    $region17: #{tpu_custom_call.1} parent=1 // pred_fallthru
      _
    // Predicated region
    $region18: #{tpu_custom_call.1} parent=1 // pred_check
      _
    $region19: #{tpu_custom_call.1} parent=1 // pred_check_branch
      %29 = sbr.rel (0) target = $region21
    $region20: #{tpu_custom_call.1} parent=1 // pred_region
      %30 = dma.done [#allocation4], 64
    $region21: #{tpu_custom_call.1} parent=1 // pred_fallthru
      _
    %v31 = vld [vmem:[%s2] sm:$0xff]
    %v32 = vld [vmem:[%s2 + $0x8] sm:$0xff]
    %v33 = vld [vmem:[%s2 + $0x10] sm:$0xff]
    %v34 = vld [vmem:[%s2 + $0x18] sm:$0xff]
    %v35 = vld [vmem:[%s2 + $0x20] sm:$0xff]
    %v36 = vld [vmem:[%s2 + $0x28] sm:$0xff]
    %v37 = vld [vmem:[%s2 + $0x30] sm:$0xff]
    %v38 = vld [vmem:[%s2 + $0x38] sm:$0xff]
    %v39 = vld [vmem:[%s2 + $0x40] sm:$0xff]
    %v40 = vld [vmem:[%s2 + $0x48] sm:$0xff]
    %v41 = vld [vmem:[%s2 + $0x50] sm:$0xff]
    %v42 = vld [vmem:[%s2 + $0x58] sm:$0xff]
    %v43 = vld [vmem:[%s2 + $0x60] sm:$0xff]
    %v44 = vld [vmem:[%s2 + $0x68] sm:$0xff]
    %v45 = vld [vmem:[%s2 + $0x70] sm:$0xff]
    %v46 = vld [vmem:[%s2 + $0x78] sm:$0xff]
    %v47 = vld [vmem:[%s3] sm:$0xff]
    %v48 = vld [vmem:[%s3 + $0x8] sm:$0xff]
    %v49 = vld [vmem:[%s3 + $0x10] sm:$0xff]
    %v50 = vld [vmem:[%s3 + $0x18] sm:$0xff]
    %v51 = vld [vmem:[%s3 + $0x20] sm:$0xff]
    %v52 = vld [vmem:[%s3 + $0x28] sm:$0xff]
    %v53 = vld [vmem:[%s3 + $0x30] sm:$0xff]
    %v54 = vld [vmem:[%s3 + $0x38] sm:$0xff]
    %v55 = vld [vmem:[%s3 + $0x40] sm:$0xff]
    %v56 = vld [vmem:[%s3 + $0x48] sm:$0xff]
    %v57 = vld [vmem:[%s3 + $0x50] sm:$0xff]
    %v58 = vld [vmem:[%s3 + $0x58] sm:$0xff]
    %v59 = vld [vmem:[%s3 + $0x60] sm:$0xff]
    %v60 = vld [vmem:[%s3 + $0x68] sm:$0xff]
    %v61 = vld [vmem:[%s3 + $0x70] sm:$0xff]
    %v62 = vld [vmem:[%s3 + $0x78] sm:$0xff]
    %v63 = vld [vmem:[#allocation3] sm:$0xf]
    %v64 = vmul.f32 %v31, %v47
    %v65 = vmul.f32 %v32, %v48
    %v66 = vmul.f32 %v33, %v49
    %v67 = vmul.f32 %v34, %v50
    %v68 = vmul.f32 %v35, %v51
    %v69 = vmul.f32 %v36, %v52
    %v70 = vmul.f32 %v37, %v53
    %v71 = vmul.f32 %v38, %v54
    %v72 = vmul.f32 %v39, %v55
    %v73 = vmul.f32 %v40, %v56
    %v74 = vmul.f32 %v41, %v57
    %v75 = vmul.f32 %v42, %v58
    %v76 = vmul.f32 %v43, %v59
    %v77 = vmul.f32 %v44, %v60
    %v78 = vmul.f32 %v45, %v61
    %v79 = vmul.f32 %v46, %v62
    %80 = vmatprep.subr.mxu0 0.0
    %v81 = vand.u32 %v64, 4294901760
    %82 = vmatpush1.xpose.msra.mxu0 %v81
    %83 = vmatprep.subr.mxu0 0.0
    %v84 = vand.u32 %v65, 4294901760
    %85 = vmatpush1.xpose.msra.mxu0 %v84
    %86 = vmatprep.subr.mxu0 0.0
    %v87 = vand.u32 %v66, 4294901760
    %88 = vmatpush1.xpose.msra.mxu0 %v87
    %89 = vmatprep.subr.mxu0 0.0
    %v90 = vand.u32 %v67, 4294901760
    %91 = vmatpush1.xpose.msra.mxu0 %v90
    %92 = vmatprep.subr.mxu0 0.0
    %v93 = vand.u32 %v68, 4294901760
    %94 = vmatpush1.xpose.msra.mxu0 %v93
    %95 = vmatprep.subr.mxu0 0.0
    %v96 = vand.u32 %v69, 4294901760
    %97 = vmatpush1.xpose.msra.mxu0 %v96
    %98 = vmatprep.subr.mxu0 0.0
    %v99 = vand.u32 %v70, 4294901760
    %100 = vmatpush1.xpose.msra.mxu0 %v99
    %101 = vmatprep.subr.mxu0 0.0
    %v102 = vand.u32 %v71, 4294901760
    %103 = vmatpush1.xpose.msra.mxu0 %v102
    %104 = vmatprep.subr.mxu0 0.0
    %v105 = vand.u32 %v72, 4294901760
    %106 = vmatpush1.xpose.msra.mxu0 %v105
    %107 = vmatprep.subr.mxu0 0.0
    %v108 = vand.u32 %v73, 4294901760
    %109 = vmatpush1.xpose.msra.mxu0 %v108
    %110 = vmatprep.subr.mxu0 0.0
    %v111 = vand.u32 %v74, 4294901760
    %112 = vmatpush1.xpose.msra.mxu0 %v111
    %113 = vmatprep.subr.mxu0 0.0
    %v114 = vand.u32 %v75, 4294901760
    %115 = vmatpush1.xpose.msra.mxu0 %v114
    %116 = vmatprep.subr.mxu0 0.0
    %v117 = vand.u32 %v76, 4294901760
    %118 = vmatpush1.xpose.msra.mxu0 %v117
    %119 = vmatprep.subr.mxu0 0.0
    %v120 = vand.u32 %v77, 4294901760
    %121 = vmatpush1.xpose.msra.mxu0 %v120
    %122 = vmatprep.subr.mxu0 0.0
    %v123 = vand.u32 %v78, 4294901760
    %124 = vmatpush1.xpose.msra.mxu0 %v123
    %125 = vmatprep.subr.mxu0 0.0
    %v126 = vand.u32 %v79, 4294901760
    %127 = vmatpush1.xpose.msra.mxu0 %v126
    %128 = vmatprep.subr.mxu0 0.0
    %129 = vmatpush1.xpose.msra.mxu0 0.0
    %130 = vmatprep.subr.mxu0 0.0
    %131 = vmatpush1.xpose.msra.mxu0 0.0
    %132 = vmatprep.subr.mxu0 0.0
    %133 = vmatpush1.xpose.msra.mxu0 0.0
    %134 = vmatprep.subr.mxu0 0.0
    %135 = vmatpush1.xpose.msra.mxu0 0.0
    %136 = vmatprep.subr.mxu0 0.0
    %137 = vmatpush1.xpose.msra.mxu0 0.0
    %138 = vmatprep.subr.mxu0 0.0
    %139 = vmatpush1.xpose.msra.mxu0 0.0
    %140 = vmatprep.subr.mxu0 0.0
    %141 = vmatpush1.xpose.msra.mxu0 0.0
    %142 = vmatprep.subr.mxu0 0.0
    %143 = vmatpush1.xpose.msra.mxu0 0.0
    %144 = vmatprep.subr.mxu0 0.0
    %145 = vmatpush1.xpose.msra.mxu0 0.0
    %146 = vmatprep.subr.mxu0 0.0
    %147 = vmatpush1.xpose.msra.mxu0 0.0
    %148 = vmatprep.subr.mxu0 0.0
    %149 = vmatpush1.xpose.msra.mxu0 0.0
    %150 = vmatprep.subr.mxu0 0.0
    %151 = vmatpush1.xpose.msra.mxu0 0.0
    %152 = vmatprep.subr.mxu0 0.0
    %153 = vmatpush1.xpose.msra.mxu0 0.0
    %154 = vmatprep.subr.mxu0 0.0
    %155 = vmatpush1.xpose.msra.mxu0 0.0
    %156 = vmatprep.subr.mxu0 0.0
    %157 = vmatpush1.xpose.msra.mxu0 0.0
    %158 = vmatprep.subr.mxu0 0.0
    %159 = vmatpush1.xpose.msra.mxu0 0.0
    %160 = vmatprep.mubr.f32.mxu0 0.0
    %v161 = vand.u32 %v63, 4294901760
    %v162 = vsub.f32 %v63, %v161
    %v163 = vand.u32 %v162, 4294901760
    %v164 = vsub.f32 %v162, %v163
    %v165 = vand.u32 %v164, 4294901760
    %166 = vmatmul.mubr.f32.gmra.mrb[0].mxu0 %v165
    %v167 = vpop.f32.mrb[0].mxu0
    %v168 = vadd.f32 0.0, %v167
    %v169 = vpop.f32.mrb[0].mxu0
    %170 = vdwg.mxu0
    %171 = vmatprep.subr.mxu0 0.0
    %v172 = vand.u32 %v64, 4294901760
    %v173 = vsub.f32 %v64, %v172
    %v174 = vand.u32 %v173, 4294901760
    %v175 = vsub.f32 %v173, %v174
    %v176 = vand.u32 %v175, 4294901760
    %177 = vmatpush1.xpose.msra.mxu0 %v176
    %178 = vmatprep.subr.mxu0 0.0
    %v179 = vand.u32 %v65, 4294901760
    %v180 = vsub.f32 %v65, %v179
    %v181 = vand.u32 %v180, 4294901760
    %v182 = vsub.f32 %v180, %v181
    %v183 = vand.u32 %v182, 4294901760
    %184 = vmatpush1.xpose.msra.mxu0 %v183
    %185 = vmatprep.subr.mxu0 0.0
    %v186 = vand.u32 %v66, 4294901760
    %v187 = vsub.f32 %v66, %v186
    %v188 = vand.u32 %v187, 4294901760
    %v189 = vsub.f32 %v187, %v188
    %v190 = vand.u32 %v189, 4294901760
    %191 = vmatpush1.xpose.msra.mxu0 %v190
    %192 = vmatprep.subr.mxu0 0.0
    %v193 = vand.u32 %v67, 4294901760
    %v194 = vsub.f32 %v67, %v193
    %v195 = vand.u32 %v194, 4294901760
    %v196 = vsub.f32 %v194, %v195
    %v197 = vand.u32 %v196, 4294901760
    %198 = vmatpush1.xpose.msra.mxu0 %v197
    %199 = vmatprep.subr.mxu0 0.0
    %v200 = vand.u32 %v68, 4294901760
    %v201 = vsub.f32 %v68, %v200
    %v202 = vand.u32 %v201, 4294901760
    %v203 = vsub.f32 %v201, %v202
    %v204 = vand.u32 %v203, 4294901760
    %205 = vmatpush1.xpose.msra.mxu0 %v204
    %206 = vmatprep.subr.mxu0 0.0
    %v207 = vand.u32 %v69, 4294901760
    %v208 = vsub.f32 %v69, %v207
    %v209 = vand.u32 %v208, 4294901760
    %v210 = vsub.f32 %v208, %v209
    %v211 = vand.u32 %v210, 4294901760
    %212 = vmatpush1.xpose.msra.mxu0 %v211
    %213 = vmatprep.subr.mxu0 0.0
    %v214 = vand.u32 %v70, 4294901760
    %v215 = vsub.f32 %v70, %v214
    %v216 = vand.u32 %v215, 4294901760
    %v217 = vsub.f32 %v215, %v216
    %v218 = vand.u32 %v217, 4294901760
    %219 = vmatpush1.xpose.msra.mxu0 %v218
    %220 = vmatprep.subr.mxu0 0.0
    %v221 = vand.u32 %v71, 4294901760
    %v222 = vsub.f32 %v71, %v221
    %v223 = vand.u32 %v222, 4294901760
    %v224 = vsub.f32 %v222, %v223
    %v225 = vand.u32 %v224, 4294901760
    %226 = vmatpush1.xpose.msra.mxu0 %v225
    %227 = vmatprep.subr.mxu0 0.0
    %v228 = vand.u32 %v72, 4294901760
    %v229 = vsub.f32 %v72, %v228
    %v230 = vand.u32 %v229, 4294901760
    %v231 = vsub.f32 %v229, %v230
    %v232 = vand.u32 %v231, 4294901760
    %233 = vmatpush1.xpose.msra.mxu0 %v232
    %234 = vmatprep.subr.mxu0 0.0
    %v235 = vand.u32 %v73, 4294901760
    %v236 = vsub.f32 %v73, %v235
    %v237 = vand.u32 %v236, 4294901760
    %v238 = vsub.f32 %v236, %v237
    %v239 = vand.u32 %v238, 4294901760
    %240 = vmatpush1.xpose.msra.mxu0 %v239
    %241 = vmatprep.subr.mxu0 0.0
    %v242 = vand.u32 %v74, 4294901760
    %v243 = vsub.f32 %v74, %v242
    %v244 = vand.u32 %v243, 4294901760
    %v245 = vsub.f32 %v243, %v244
    %v246 = vand.u32 %v245, 4294901760
    %247 = vmatpush1.xpose.msra.mxu0 %v246
    %248 = vmatprep.subr.mxu0 0.0
    %v249 = vand.u32 %v75, 4294901760
    %v250 = vsub.f32 %v75, %v249
    %v251 = vand.u32 %v250, 4294901760
    %v252 = vsub.f32 %v250, %v251
    %v253 = vand.u32 %v252, 4294901760
    %254 = vmatpush1.xpose.msra.mxu0 %v253
    %255 = vmatprep.subr.mxu0 0.0
    %v256 = vand.u32 %v76, 4294901760
    %v257 = vsub.f32 %v76, %v256
    %v258 = vand.u32 %v257, 4294901760
    %v259 = vsub.f32 %v257, %v258
    %v260 = vand.u32 %v259, 4294901760
    %261 = vmatpush1.xpose.msra.mxu0 %v260
    %262 = vmatprep.subr.mxu0 0.0
    %v263 = vand.u32 %v77, 4294901760
    %v264 = vsub.f32 %v77, %v263
    %v265 = vand.u32 %v264, 4294901760
    %v266 = vsub.f32 %v264, %v265
    %v267 = vand.u32 %v266, 4294901760
    %268 = vmatpush1.xpose.msra.mxu0 %v267
    %269 = vmatprep.subr.mxu0 0.0
    %v270 = vand.u32 %v78, 4294901760
    %v271 = vsub.f32 %v78, %v270
    %v272 = vand.u32 %v271, 4294901760
    %v273 = vsub.f32 %v271, %v272
    %v274 = vand.u32 %v273, 4294901760
    %275 = vmatpush1.xpose.msra.mxu0 %v274
    %276 = vmatprep.subr.mxu0 0.0
    %v277 = vand.u32 %v79, 4294901760
    %v278 = vsub.f32 %v79, %v277
    %v279 = vand.u32 %v278, 4294901760
    %v280 = vsub.f32 %v278, %v279
    %v281 = vand.u32 %v280, 4294901760
    %282 = vmatpush1.xpose.msra.mxu0 %v281
    %283 = vmatprep.subr.mxu0 0.0
    %284 = vmatpush1.xpose.msra.mxu0 0.0
    %285 = vmatprep.subr.mxu0 0.0
    %286 = vmatpush1.xpose.msra.mxu0 0.0
    %287 = vmatprep.subr.mxu0 0.0
    %288 = vmatpush1.xpose.msra.mxu0 0.0
    %289 = vmatprep.subr.mxu0 0.0
    %290 = vmatpush1.xpose.msra.mxu0 0.0
    %291 = vmatprep.subr.mxu0 0.0
    %292 = vmatpush1.xpose.msra.mxu0 0.0
    %293 = vmatprep.subr.mxu0 0.0
    %294 = vmatpush1.xpose.msra.mxu0 0.0
    %295 = vmatprep.subr.mxu0 0.0
    %296 = vmatpush1.xpose.msra.mxu0 0.0
    %297 = vmatprep.subr.mxu0 0.0
    %298 = vmatpush1.xpose.msra.mxu0 0.0
    %299 = vmatprep.subr.mxu0 0.0
    %300 = vmatpush1.xpose.msra.mxu0 0.0
    %301 = vmatprep.subr.mxu0 0.0
    %302 = vmatpush1.xpose.msra.mxu0 0.0
    %303 = vmatprep.subr.mxu0 0.0
    %304 = vmatpush1.xpose.msra.mxu0 0.0
    %305 = vmatprep.subr.mxu0 0.0
    %306 = vmatpush1.xpose.msra.mxu0 0.0
    %307 = vmatprep.subr.mxu0 0.0
    %308 = vmatpush1.xpose.msra.mxu0 0.0
    %309 = vmatprep.subr.mxu0 0.0
    %310 = vmatpush1.xpose.msra.mxu0 0.0
    %311 = vmatprep.subr.mxu0 0.0
    %312 = vmatpush1.xpose.msra.mxu0 0.0
    %313 = vmatprep.subr.mxu0 0.0
    %314 = vmatpush1.xpose.msra.mxu0 0.0
    %315 = vmatprep.mubr.f32.mxu0 0.0
    %v316 = vand.u32 %v63, 4294901760
    %317 = vmatmul.mubr.f32.gmra.mrb[0].mxu0 %v316
    %v318 = vpop.f32.mrb[0].mxu0
    %v319 = vadd.f32 %v168, %v318
    %v320 = vpop.f32.mrb[0].mxu0
    %321 = vdwg.mxu0
    %322 = vmatprep.subr.mxu0 0.0
    %v323 = vand.u32 %v64, 4294901760
    %v324 = vsub.f32 %v64, %v323
    %325 = vmatpush1.xpose.msra.mxu0 %v324
    %326 = vmatprep.subr.mxu0 0.0
    %v327 = vand.u32 %v65, 4294901760
    %v328 = vsub.f32 %v65, %v327
    %329 = vmatpush1.xpose.msra.mxu0 %v328
    %330 = vmatprep.subr.mxu0 0.0
    %v331 = vand.u32 %v66, 4294901760
    %v332 = vsub.f32 %v66, %v331
    %333 = vmatpush1.xpose.msra.mxu0 %v332
    %334 = vmatprep.subr.mxu0 0.0
    %v335 = vand.u32 %v67, 4294901760
    %v336 = vsub.f32 %v67, %v335
    %337 = vmatpush1.xpose.msra.mxu0 %v336
    %338 = vmatprep.subr.mxu0 0.0
    %v339 = vand.u32 %v68, 4294901760
    %v340 = vsub.f32 %v68, %v339
    %341 = vmatpush1.xpose.msra.mxu0 %v340
    %342 = vmatprep.subr.mxu0 0.0
    %v343 = vand.u32 %v69, 4294901760
    %v344 = vsub.f32 %v69, %v343
    %345 = vmatpush1.xpose.msra.mxu0 %v344
    %346 = vmatprep.subr.mxu0 0.0
    %v347 = vand.u32 %v70, 4294901760
    %v348 = vsub.f32 %v70, %v347
    %349 = vmatpush1.xpose.msra.mxu0 %v348
    %350 = vmatprep.subr.mxu0 0.0
    %v351 = vand.u32 %v71, 4294901760
    %v352 = vsub.f32 %v71, %v351
    %353 = vmatpush1.xpose.msra.mxu0 %v352
    %354 = vmatprep.subr.mxu0 0.0
    %v355 = vand.u32 %v72, 4294901760
    %v356 = vsub.f32 %v72, %v355
    %357 = vmatpush1.xpose.msra.mxu0 %v356
    %358 = vmatprep.subr.mxu0 0.0
    %v359 = vand.u32 %v73, 4294901760
    %v360 = vsub.f32 %v73, %v359
    %361 = vmatpush1.xpose.msra.mxu0 %v360
    %362 = vmatprep.subr.mxu0 0.0
    %v363 = vand.u32 %v74, 4294901760
    %v364 = vsub.f32 %v74, %v363
    %365 = vmatpush1.xpose.msra.mxu0 %v364
    %366 = vmatprep.subr.mxu0 0.0
    %v367 = vand.u32 %v75, 4294901760
    %v368 = vsub.f32 %v75, %v367
    %369 = vmatpush1.xpose.msra.mxu0 %v368
    %370 = vmatprep.subr.mxu0 0.0
    %v371 = vand.u32 %v76, 4294901760
    %v372 = vsub.f32 %v76, %v371
    %373 = vmatpush1.xpose.msra.mxu0 %v372
    %374 = vmatprep.subr.mxu0 0.0
    %v375 = vand.u32 %v77, 4294901760
    %v376 = vsub.f32 %v77, %v375
    %377 = vmatpush1.xpose.msra.mxu0 %v376
    %378 = vmatprep.subr.mxu0 0.0
    %v379 = vand.u32 %v78, 4294901760
    %v380 = vsub.f32 %v78, %v379
    %381 = vmatpush1.xpose.msra.mxu0 %v380
    %382 = vmatprep.subr.mxu0 0.0
    %v383 = vand.u32 %v79, 4294901760
    %v384 = vsub.f32 %v79, %v383
    %385 = vmatpush1.xpose.msra.mxu0 %v384
    %386 = vmatprep.subr.mxu0 0.0
    %387 = vmatpush1.xpose.msra.mxu0 0.0
    %388 = vmatprep.subr.mxu0 0.0
    %389 = vmatpush1.xpose.msra.mxu0 0.0
    %390 = vmatprep.subr.mxu0 0.0
    %391 = vmatpush1.xpose.msra.mxu0 0.0
    %392 = vmatprep.subr.mxu0 0.0
    %393 = vmatpush1.xpose.msra.mxu0 0.0
    %394 = vmatprep.subr.mxu0 0.0
    %395 = vmatpush1.xpose.msra.mxu0 0.0
    %396 = vmatprep.subr.mxu0 0.0
    %397 = vmatpush1.xpose.msra.mxu0 0.0
    %398 = vmatprep.subr.mxu0 0.0
    %399 = vmatpush1.xpose.msra.mxu0 0.0
    %400 = vmatprep.subr.mxu0 0.0
    %401 = vmatpush1.xpose.msra.mxu0 0.0
    %402 = vmatprep.subr.mxu0 0.0
    %403 = vmatpush1.xpose.msra.mxu0 0.0
    %404 = vmatprep.subr.mxu0 0.0
    %405 = vmatpush1.xpose.msra.mxu0 0.0
    %406 = vmatprep.subr.mxu0 0.0
    %407 = vmatpush1.xpose.msra.mxu0 0.0
    %408 = vmatprep.subr.mxu0 0.0
    %409 = vmatpush1.xpose.msra.mxu0 0.0
    %410 = vmatprep.subr.mxu0 0.0
    %411 = vmatpush1.xpose.msra.mxu0 0.0
    %412 = vmatprep.subr.mxu0 0.0
    %413 = vmatpush1.xpose.msra.mxu0 0.0
    %414 = vmatprep.subr.mxu0 0.0
    %415 = vmatpush1.xpose.msra.mxu0 0.0
    %416 = vmatprep.subr.mxu0 0.0
    %417 = vmatpush1.xpose.msra.mxu0 0.0
    %418 = vmatprep.mubr.f32.mxu0 0.0
    %v419 = vand.u32 %v63, 4294901760
    %v420 = vsub.f32 %v63, %v419
    %421 = vmatmul.mubr.f32.gmra.mrb[0].mxu0 %v420
    %v422 = vpop.f32.mrb[0].mxu0
    %v423 = vadd.f32 %v319, %v422
    %v424 = vpop.f32.mrb[0].mxu0
    %425 = vdwg.mxu0
    %426 = vmatprep.subr.mxu0 0.0
    %v427 = vand.u32 %v64, 4294901760
    %428 = vmatpush1.xpose.msra.mxu0 %v427
    %429 = vmatprep.subr.mxu0 0.0
    %v430 = vand.u32 %v65, 4294901760
    %431 = vmatpush1.xpose.msra.mxu0 %v430
    %432 = vmatprep.subr.mxu0 0.0
    %v433 = vand.u32 %v66, 4294901760
    %434 = vmatpush1.xpose.msra.mxu0 %v433
    %435 = vmatprep.subr.mxu0 0.0
    %v436 = vand.u32 %v67, 4294901760
    %437 = vmatpush1.xpose.msra.mxu0 %v436
    %438 = vmatprep.subr.mxu0 0.0
    %v439 = vand.u32 %v68, 4294901760
    %440 = vmatpush1.xpose.msra.mxu0 %v439
    %441 = vmatprep.subr.mxu0 0.0
    %v442 = vand.u32 %v69, 4294901760
    %443 = vmatpush1.xpose.msra.mxu0 %v442
    %444 = vmatprep.subr.mxu0 0.0
    %v445 = vand.u32 %v70, 4294901760
    %446 = vmatpush1.xpose.msra.mxu0 %v445
    %447 = vmatprep.subr.mxu0 0.0
    %v448 = vand.u32 %v71, 4294901760
    %449 = vmatpush1.xpose.msra.mxu0 %v448
    %450 = vmatprep.subr.mxu0 0.0
    %v451 = vand.u32 %v72, 4294901760
    %452 = vmatpush1.xpose.msra.mxu0 %v451
    %453 = vmatprep.subr.mxu0 0.0
    %v454 = vand.u32 %v73, 4294901760
    %455 = vmatpush1.xpose.msra.mxu0 %v454
    %456 = vmatprep.subr.mxu0 0.0
    %v457 = vand.u32 %v74, 4294901760
    %458 = vmatpush1.xpose.msra.mxu0 %v457
    %459 = vmatprep.subr.mxu0 0.0
    %v460 = vand.u32 %v75, 4294901760
    %461 = vmatpush1.xpose.msra.mxu0 %v460
    %462 = vmatprep.subr.mxu0 0.0
    %v463 = vand.u32 %v76, 4294901760
    %464 = vmatpush1.xpose.msra.mxu0 %v463
    %465 = vmatprep.subr.mxu0 0.0
    %v466 = vand.u32 %v77, 4294901760
    %467 = vmatpush1.xpose.msra.mxu0 %v466
    %468 = vmatprep.subr.mxu0 0.0
    %v469 = vand.u32 %v78, 4294901760
    %470 = vmatpush1.xpose.msra.mxu0 %v469
    %471 = vmatprep.subr.mxu0 0.0
    %v472 = vand.u32 %v79, 4294901760
    %473 = vmatpush1.xpose.msra.mxu0 %v472
    %474 = vmatprep.subr.mxu0 0.0
    %475 = vmatpush1.xpose.msra.mxu0 0.0
    %476 = vmatprep.subr.mxu0 0.0
    %477 = vmatpush1.xpose.msra.mxu0 0.0
    %478 = vmatprep.subr.mxu0 0.0
    %479 = vmatpush1.xpose.msra.mxu0 0.0
    %480 = vmatprep.subr.mxu0 0.0
    %481 = vmatpush1.xpose.msra.mxu0 0.0
    %482 = vmatprep.subr.mxu0 0.0
    %483 = vmatpush1.xpose.msra.mxu0 0.0
    %484 = vmatprep.subr.mxu0 0.0
    %485 = vmatpush1.xpose.msra.mxu0 0.0
    %486 = vmatprep.subr.mxu0 0.0
    %487 = vmatpush1.xpose.msra.mxu0 0.0
    %488 = vmatprep.subr.mxu0 0.0
    %489 = vmatpush1.xpose.msra.mxu0 0.0
    %490 = vmatprep.subr.mxu0 0.0
    %491 = vmatpush1.xpose.msra.mxu0 0.0
    %492 = vmatprep.subr.mxu0 0.0
    %493 = vmatpush1.xpose.msra.mxu0 0.0
    %494 = vmatprep.subr.mxu0 0.0
    %495 = vmatpush1.xpose.msra.mxu0 0.0
    %496 = vmatprep.subr.mxu0 0.0
    %497 = vmatpush1.xpose.msra.mxu0 0.0
    %498 = vmatprep.subr.mxu0 0.0
    %499 = vmatpush1.xpose.msra.mxu0 0.0
    %500 = vmatprep.subr.mxu0 0.0
    %501 = vmatpush1.xpose.msra.mxu0 0.0
    %502 = vmatprep.subr.mxu0 0.0
    %503 = vmatpush1.xpose.msra.mxu0 0.0
    %504 = vmatprep.subr.mxu0 0.0
    %505 = vmatpush1.xpose.msra.mxu0 0.0
    %506 = vmatprep.mubr.f32.mxu0 0.0
    %v507 = vand.u32 %v63, 4294901760
    %v508 = vsub.f32 %v63, %v507
    %v509 = vand.u32 %v508, 4294901760
    %510 = vmatmul.mubr.f32.gmra.mrb[0].mxu0 %v509
    %v511 = vpop.f32.mrb[0].mxu0
    %v512 = vadd.f32 %v423, %v511
    %v513 = vpop.f32.mrb[0].mxu0
    %514 = vdwg.mxu0
    %515 = vmatprep.subr.mxu0 0.0
    %v516 = vand.u32 %v64, 4294901760
    %v517 = vsub.f32 %v64, %v516
    %v518 = vand.u32 %v517, 4294901760
    %519 = vmatpush1.xpose.msra.mxu0 %v518
    %520 = vmatprep.subr.mxu0 0.0
    %v521 = vand.u32 %v65, 4294901760
    %v522 = vsub.f32 %v65, %v521
    %v523 = vand.u32 %v522, 4294901760
    %524 = vmatpush1.xpose.msra.mxu0 %v523
    %525 = vmatprep.subr.mxu0 0.0
    %v526 = vand.u32 %v66, 4294901760
    %v527 = vsub.f32 %v66, %v526
    %v528 = vand.u32 %v527, 4294901760
    %529 = vmatpush1.xpose.msra.mxu0 %v528
    %530 = vmatprep.subr.mxu0 0.0
    %v531 = vand.u32 %v67, 4294901760
    %v532 = vsub.f32 %v67, %v531
    %v533 = vand.u32 %v532, 4294901760
    %534 = vmatpush1.xpose.msra.mxu0 %v533
    %535 = vmatprep.subr.mxu0 0.0
    %v536 = vand.u32 %v68, 4294901760
    %v537 = vsub.f32 %v68, %v536
    %v538 = vand.u32 %v537, 4294901760
    %539 = vmatpush1.xpose.msra.mxu0 %v538
    %540 = vmatprep.subr.mxu0 0.0
    %v541 = vand.u32 %v69, 4294901760
    %v542 = vsub.f32 %v69, %v541
    %v543 = vand.u32 %v542, 4294901760
    %544 = vmatpush1.xpose.msra.mxu0 %v543
    %545 = vmatprep.subr.mxu0 0.0
    %v546 = vand.u32 %v70, 4294901760
    %v547 = vsub.f32 %v70, %v546
    %v548 = vand.u32 %v547, 4294901760
    %549 = vmatpush1.xpose.msra.mxu0 %v548
    %550 = vmatprep.subr.mxu0 0.0
    %v551 = vand.u32 %v71, 4294901760
    %v552 = vsub.f32 %v71, %v551
    %v553 = vand.u32 %v552, 4294901760
    %554 = vmatpush1.xpose.msra.mxu0 %v553
    %555 = vmatprep.subr.mxu0 0.0
    %v556 = vand.u32 %v72, 4294901760
    %v557 = vsub.f32 %v72, %v556
    %v558 = vand.u32 %v557, 4294901760
    %559 = vmatpush1.xpose.msra.mxu0 %v558
    %560 = vmatprep.subr.mxu0 0.0
    %v561 = vand.u32 %v73, 4294901760
    %v562 = vsub.f32 %v73, %v561
    %v563 = vand.u32 %v562, 4294901760
    %564 = vmatpush1.xpose.msra.mxu0 %v563
    %565 = vmatprep.subr.mxu0 0.0
    %v566 = vand.u32 %v74, 4294901760
    %v567 = vsub.f32 %v74, %v566
    %v568 = vand.u32 %v567, 4294901760
    %569 = vmatpush1.xpose.msra.mxu0 %v568
    %570 = vmatprep.subr.mxu0 0.0
    %v571 = vand.u32 %v75, 4294901760
    %v572 = vsub.f32 %v75, %v571
    %v573 = vand.u32 %v572, 4294901760
    %574 = vmatpush1.xpose.msra.mxu0 %v573
    %575 = vmatprep.subr.mxu0 0.0
    %v576 = vand.u32 %v76, 4294901760
    %v577 = vsub.f32 %v76, %v576
    %v578 = vand.u32 %v577, 4294901760
    %579 = vmatpush1.xpose.msra.mxu0 %v578
    %580 = vmatprep.subr.mxu0 0.0
    %v581 = vand.u32 %v77, 4294901760
    %v582 = vsub.f32 %v77, %v581
    %v583 = vand.u32 %v582, 4294901760
    %584 = vmatpush1.xpose.msra.mxu0 %v583
    %585 = vmatprep.subr.mxu0 0.0
    %v586 = vand.u32 %v78, 4294901760
    %v587 = vsub.f32 %v78, %v586
    %v588 = vand.u32 %v587, 4294901760
    %589 = vmatpush1.xpose.msra.mxu0 %v588
    %590 = vmatprep.subr.mxu0 0.0
    %v591 = vand.u32 %v79, 4294901760
    %v592 = vsub.f32 %v79, %v591
    %v593 = vand.u32 %v592, 4294901760
    %594 = vmatpush1.xpose.msra.mxu0 %v593
    %595 = vmatprep.subr.mxu0 0.0
    %596 = vmatpush1.xpose.msra.mxu0 0.0
    %597 = vmatprep.subr.mxu0 0.0
    %598 = vmatpush1.xpose.msra.mxu0 0.0
    %599 = vmatprep.subr.mxu0 0.0
    %600 = vmatpush1.xpose.msra.mxu0 0.0
    %601 = vmatprep.subr.mxu0 0.0
    %602 = vmatpush1.xpose.msra.mxu0 0.0
    %603 = vmatprep.subr.mxu0 0.0
    %604 = vmatpush1.xpose.msra.mxu0 0.0
    %605 = vmatprep.subr.mxu0 0.0
    %606 = vmatpush1.xpose.msra.mxu0 0.0
    %607 = vmatprep.subr.mxu0 0.0
    %608 = vmatpush1.xpose.msra.mxu0 0.0
    %609 = vmatprep.subr.mxu0 0.0
    %610 = vmatpush1.xpose.msra.mxu0 0.0
    %611 = vmatprep.subr.mxu0 0.0
    %612 = vmatpush1.xpose.msra.mxu0 0.0
    %613 = vmatprep.subr.mxu0 0.0
    %614 = vmatpush1.xpose.msra.mxu0 0.0
    %615 = vmatprep.subr.mxu0 0.0
    %616 = vmatpush1.xpose.msra.mxu0 0.0
    %617 = vmatprep.subr.mxu0 0.0
    %618 = vmatpush1.xpose.msra.mxu0 0.0
    %619 = vmatprep.subr.mxu0 0.0
    %620 = vmatpush1.xpose.msra.mxu0 0.0
    %621 = vmatprep.subr.mxu0 0.0
    %622 = vmatpush1.xpose.msra.mxu0 0.0
    %623 = vmatprep.subr.mxu0 0.0
    %624 = vmatpush1.xpose.msra.mxu0 0.0
    %625 = vmatprep.subr.mxu0 0.0
    %626 = vmatpush1.xpose.msra.mxu0 0.0
    %627 = vmatprep.mubr.f32.mxu0 0.0
    %v628 = vand.u32 %v63, 4294901760
    %629 = vmatmul.mubr.f32.gmra.mrb[0].mxu0 %v628
    %v630 = vpop.f32.mrb[0].mxu0
    %v631 = vadd.f32 %v512, %v630
    %v632 = vpop.f32.mrb[0].mxu0
    %633 = vdwg.mxu0
    %634 = vmatprep.subr.mxu0 0.0
    %v635 = vand.u32 %v64, 4294901760
    %636 = vmatpush1.xpose.msra.mxu0 %v635
    %637 = vmatprep.subr.mxu0 0.0
    %v638 = vand.u32 %v65, 4294901760
    %639 = vmatpush1.xpose.msra.mxu0 %v638
    %640 = vmatprep.subr.mxu0 0.0
    %v641 = vand.u32 %v66, 4294901760
    %642 = vmatpush1.xpose.msra.mxu0 %v641
    %643 = vmatprep.subr.mxu0 0.0
    %v644 = vand.u32 %v67, 4294901760
    %645 = vmatpush1.xpose.msra.mxu0 %v644
    %646 = vmatprep.subr.mxu0 0.0
    %v647 = vand.u32 %v68, 4294901760
    %648 = vmatpush1.xpose.msra.mxu0 %v647
    %649 = vmatprep.subr.mxu0 0.0
    %v650 = vand.u32 %v69, 4294901760
    %651 = vmatpush1.xpose.msra.mxu0 %v650
    %652 = vmatprep.subr.mxu0 0.0
    %v653 = vand.u32 %v70, 4294901760
    %654 = vmatpush1.xpose.msra.mxu0 %v653
    %655 = vmatprep.subr.mxu0 0.0
    %v656 = vand.u32 %v71, 4294901760
    %657 = vmatpush1.xpose.msra.mxu0 %v656
    %658 = vmatprep.subr.mxu0 0.0
    %v659 = vand.u32 %v72, 4294901760
    %660 = vmatpush1.xpose.msra.mxu0 %v659
    %661 = vmatprep.subr.mxu0 0.0
    %v662 = vand.u32 %v73, 4294901760
    %663 = vmatpush1.xpose.msra.mxu0 %v662
    %664 = vmatprep.subr.mxu0 0.0
    %v665 = vand.u32 %v74, 4294901760
    %666 = vmatpush1.xpose.msra.mxu0 %v665
    %667 = vmatprep.subr.mxu0 0.0
    %v668 = vand.u32 %v75, 4294901760
    %669 = vmatpush1.xpose.msra.mxu0 %v668
    %670 = vmatprep.subr.mxu0 0.0
    %v671 = vand.u32 %v76, 4294901760
    %672 = vmatpush1.xpose.msra.mxu0 %v671
    %673 = vmatprep.subr.mxu0 0.0
    %v674 = vand.u32 %v77, 4294901760
    %675 = vmatpush1.xpose.msra.mxu0 %v674
    %676 = vmatprep.subr.mxu0 0.0
    %v677 = vand.u32 %v78, 4294901760
    %678 = vmatpush1.xpose.msra.mxu0 %v677
    %679 = vmatprep.subr.mxu0 0.0
    %v680 = vand.u32 %v79, 4294901760
    %681 = vmatpush1.xpose.msra.mxu0 %v680
    %682 = vmatprep.subr.mxu0 0.0
    %683 = vmatpush1.xpose.msra.mxu0 0.0
    %684 = vmatprep.subr.mxu0 0.0
    %685 = vmatpush1.xpose.msra.mxu0 0.0
    %686 = vmatprep.subr.mxu0 0.0
    %687 = vmatpush1.xpose.msra.mxu0 0.0
    %688 = vmatprep.subr.mxu0 0.0
    %689 = vmatpush1.xpose.msra.mxu0 0.0
    %690 = vmatprep.subr.mxu0 0.0
    %691 = vmatpush1.xpose.msra.mxu0 0.0
    %692 = vmatprep.subr.mxu0 0.0
    %693 = vmatpush1.xpose.msra.mxu0 0.0
    %694 = vmatprep.subr.mxu0 0.0
    %695 = vmatpush1.xpose.msra.mxu0 0.0
    %696 = vmatprep.subr.mxu0 0.0
    %697 = vmatpush1.xpose.msra.mxu0 0.0
    %698 = vmatprep.subr.mxu0 0.0
    %699 = vmatpush1.xpose.msra.mxu0 0.0
    %700 = vmatprep.subr.mxu0 0.0
    %701 = vmatpush1.xpose.msra.mxu0 0.0
    %702 = vmatprep.subr.mxu0 0.0
    %703 = vmatpush1.xpose.msra.mxu0 0.0
    %704 = vmatprep.subr.mxu0 0.0
    %705 = vmatpush1.xpose.msra.mxu0 0.0
    %706 = vmatprep.subr.mxu0 0.0
    %707 = vmatpush1.xpose.msra.mxu0 0.0
    %708 = vmatprep.subr.mxu0 0.0
    %709 = vmatpush1.xpose.msra.mxu0 0.0
    %710 = vmatprep.subr.mxu0 0.0
    %711 = vmatpush1.xpose.msra.mxu0 0.0
    %712 = vmatprep.subr.mxu0 0.0
    %713 = vmatpush1.xpose.msra.mxu0 0.0
    %714 = vmatprep.mubr.f32.mxu0 0.0
    %v715 = vand.u32 %v63, 4294901760
    %716 = vmatmul.mubr.f32.gmra.mrb[0].mxu0 %v715
    %v717 = vpop.f32.mrb[0].mxu0
    %v718 = vadd.f32 %v631, %v717
    %v719 = vpop.f32.mrb[0].mxu0
    %720 = vdwg.mxu0
    %v721 = vmul.f32 %v31, %v31
    %v722 = vmul.f32 %v32, %v32
    %v723 = vmul.f32 %v33, %v33
    %v724 = vmul.f32 %v34, %v34
    %v725 = vmul.f32 %v35, %v35
    %v726 = vmul.f32 %v36, %v36
    %v727 = vmul.f32 %v37, %v37
    %v728 = vmul.f32 %v38, %v38
    %v729 = vmul.f32 %v39, %v39
    %v730 = vmul.f32 %v40, %v40
    %v731 = vmul.f32 %v41, %v41
    %v732 = vmul.f32 %v42, %v42
    %v733 = vmul.f32 %v43, %v43
    %v734 = vmul.f32 %v44, %v44
    %v735 = vmul.f32 %v45, %v45
    %v736 = vmul.f32 %v46, %v46
    %737 = vmatprep.subr.mxu0 0.0
    %v738 = vand.u32 %v721, 4294901760
    %739 = vmatpush1.xpose.msra.mxu0 %v738
    %740 = vmatprep.subr.mxu0 0.0
    %v741 = vand.u32 %v722, 4294901760
    %742 = vmatpush1.xpose.msra.mxu0 %v741
    %743 = vmatprep.subr.mxu0 0.0
    %v744 = vand.u32 %v723, 4294901760
    %745 = vmatpush1.xpose.msra.mxu0 %v744
    %746 = vmatprep.subr.mxu0 0.0
    %v747 = vand.u32 %v724, 4294901760
    %748 = vmatpush1.xpose.msra.mxu0 %v747
    %749 = vmatprep.subr.mxu0 0.0
    %v750 = vand.u32 %v725, 4294901760
    %751 = vmatpush1.xpose.msra.mxu0 %v750
    %752 = vmatprep.subr.mxu0 0.0
    %v753 = vand.u32 %v726, 4294901760
    %754 = vmatpush1.xpose.msra.mxu0 %v753
    %755 = vmatprep.subr.mxu0 0.0
    %v756 = vand.u32 %v727, 4294901760
    %757 = vmatpush1.xpose.msra.mxu0 %v756
    %758 = vmatprep.subr.mxu0 0.0
    %v759 = vand.u32 %v728, 4294901760
    %760 = vmatpush1.xpose.msra.mxu0 %v759
    %761 = vmatprep.subr.mxu0 0.0
    %v762 = vand.u32 %v729, 4294901760
    %763 = vmatpush1.xpose.msra.mxu0 %v762
    %764 = vmatprep.subr.mxu0 0.0
    %v765 = vand.u32 %v730, 4294901760
    %766 = vmatpush1.xpose.msra.mxu0 %v765
    %767 = vmatprep.subr.mxu0 0.0
    %v768 = vand.u32 %v731, 4294901760
    %769 = vmatpush1.xpose.msra.mxu0 %v768
    %770 = vmatprep.subr.mxu0 0.0
    %v771 = vand.u32 %v732, 4294901760
    %772 = vmatpush1.xpose.msra.mxu0 %v771
    %773 = vmatprep.subr.mxu0 0.0
    %v774 = vand.u32 %v733, 4294901760
    %775 = vmatpush1.xpose.msra.mxu0 %v774
    %776 = vmatprep.subr.mxu0 0.0
    %v777 = vand.u32 %v734, 4294901760
    %778 = vmatpush1.xpose.msra.mxu0 %v777
    %779 = vmatprep.subr.mxu0 0.0
    %v780 = vand.u32 %v735, 4294901760
    %781 = vmatpush1.xpose.msra.mxu0 %v780
    %782 = vmatprep.subr.mxu0 0.0
    %v783 = vand.u32 %v736, 4294901760
    %784 = vmatpush1.xpose.msra.mxu0 %v783
    %785 = vmatprep.subr.mxu0 0.0
    %786 = vmatpush1.xpose.msra.mxu0 0.0
    %787 = vmatprep.subr.mxu0 0.0
    %788 = vmatpush1.xpose.msra.mxu0 0.0
    %789 = vmatprep.subr.mxu0 0.0
    %790 = vmatpush1.xpose.msra.mxu0 0.0
    %791 = vmatprep.subr.mxu0 0.0
    %792 = vmatpush1.xpose.msra.mxu0 0.0
    %793 = vmatprep.subr.mxu0 0.0
    %794 = vmatpush1.xpose.msra.mxu0 0.0
    %795 = vmatprep.subr.mxu0 0.0
    %796 = vmatpush1.xpose.msra.mxu0 0.0
    %797 = vmatprep.subr.mxu0 0.0
    %798 = vmatpush1.xpose.msra.mxu0 0.0
    %799 = vmatprep.subr.mxu0 0.0
    %800 = vmatpush1.xpose.msra.mxu0 0.0
    %801 = vmatprep.subr.mxu0 0.0
    %802 = vmatpush1.xpose.msra.mxu0 0.0
    %803 = vmatprep.subr.mxu0 0.0
    %804 = vmatpush1.xpose.msra.mxu0 0.0
    %805 = vmatprep.subr.mxu0 0.0
    %806 = vmatpush1.xpose.msra.mxu0 0.0
    %807 = vmatprep.subr.mxu0 0.0
    %808 = vmatpush1.xpose.msra.mxu0 0.0
    %809 = vmatprep.subr.mxu0 0.0
    %810 = vmatpush1.xpose.msra.mxu0 0.0
    %811 = vmatprep.subr.mxu0 0.0
    %812 = vmatpush1.xpose.msra.mxu0 0.0
    %813 = vmatprep.subr.mxu0 0.0
    %814 = vmatpush1.xpose.msra.mxu0 0.0
    %815 = vmatprep.subr.mxu0 0.0
    %816 = vmatpush1.xpose.msra.mxu0 0.0
    %817 = vmatprep.mubr.f32.mxu0 0.0
    %v818 = vand.u32 %v63, 4294901760
    %v819 = vsub.f32 %v63, %v818
    %v820 = vand.u32 %v819, 4294901760
    %v821 = vsub.f32 %v819, %v820
    %v822 = vand.u32 %v821, 4294901760
    %823 = vmatmul.mubr.f32.gmra.mrb[0].mxu0 %v822
    %v824 = vpop.f32.mrb[0].mxu0
    %v825 = vadd.f32 0.0, %v824
    %v826 = vpop.f32.mrb[0].mxu0
    %827 = vdwg.mxu0
    %828 = vmatprep.subr.mxu0 0.0
    %v829 = vand.u32 %v721, 4294901760
    %v830 = vsub.f32 %v721, %v829
    %v831 = vand.u32 %v830, 4294901760
    %v832 = vsub.f32 %v830, %v831
    %v833 = vand.u32 %v832, 4294901760
    %834 = vmatpush1.xpose.msra.mxu0 %v833
    %835 = vmatprep.subr.mxu0 0.0
    %v836 = vand.u32 %v722, 4294901760
    %v837 = vsub.f32 %v722, %v836
    %v838 = vand.u32 %v837, 4294901760
    %v839 = vsub.f32 %v837, %v838
    %v840 = vand.u32 %v839, 4294901760
    %841 = vmatpush1.xpose.msra.mxu0 %v840
    %842 = vmatprep.subr.mxu0 0.0
    %v843 = vand.u32 %v723, 4294901760
    %v844 = vsub.f32 %v723, %v843
    %v845 = vand.u32 %v844, 4294901760
    %v846 = vsub.f32 %v844, %v845
    %v847 = vand.u32 %v846, 4294901760
    %848 = vmatpush1.xpose.msra.mxu0 %v847
    %849 = vmatprep.subr.mxu0 0.0
    %v850 = vand.u32 %v724, 4294901760
    %v851 = vsub.f32 %v724, %v850
    %v852 = vand.u32 %v851, 4294901760
    %v853 = vsub.f32 %v851, %v852
    %v854 = vand.u32 %v853, 4294901760
    %855 = vmatpush1.xpose.msra.mxu0 %v854
    %856 = vmatprep.subr.mxu0 0.0
    %v857 = vand.u32 %v725, 4294901760
    %v858 = vsub.f32 %v725, %v857
    %v859 = vand.u32 %v858, 4294901760
    %v860 = vsub.f32 %v858, %v859
    %v861 = vand.u32 %v860, 4294901760
    %862 = vmatpush1.xpose.msra.mxu0 %v861
    %863 = vmatprep.subr.mxu0 0.0
    %v864 = vand.u32 %v726, 4294901760
    %v865 = vsub.f32 %v726, %v864
    %v866 = vand.u32 %v865, 4294901760
    %v867 = vsub.f32 %v865, %v866
    %v868 = vand.u32 %v867, 4294901760
    %869 = vmatpush1.xpose.msra.mxu0 %v868
    %870 = vmatprep.subr.mxu0 0.0
    %v871 = vand.u32 %v727, 4294901760
    %v872 = vsub.f32 %v727, %v871
    %v873 = vand.u32 %v872, 4294901760
    %v874 = vsub.f32 %v872, %v873
    %v875 = vand.u32 %v874, 4294901760
    %876 = vmatpush1.xpose.msra.mxu0 %v875
    %877 = vmatprep.subr.mxu0 0.0
    %v878 = vand.u32 %v728, 4294901760
    %v879 = vsub.f32 %v728, %v878
    %v880 = vand.u32 %v879, 4294901760
    %v881 = vsub.f32 %v879, %v880
    %v882 = vand.u32 %v881, 4294901760
    %883 = vmatpush1.xpose.msra.mxu0 %v882
    %884 = vmatprep.subr.mxu0 0.0
    %v885 = vand.u32 %v729, 4294901760
    %v886 = vsub.f32 %v729, %v885
    %v887 = vand.u32 %v886, 4294901760
    %v888 = vsub.f32 %v886, %v887
    %v889 = vand.u32 %v888, 4294901760
    %890 = vmatpush1.xpose.msra.mxu0 %v889
    %891 = vmatprep.subr.mxu0 0.0
    %v892 = vand.u32 %v730, 4294901760
    %v893 = vsub.f32 %v730, %v892
    %v894 = vand.u32 %v893, 4294901760
    %v895 = vsub.f32 %v893, %v894
    %v896 = vand.u32 %v895, 4294901760
    %897 = vmatpush1.xpose.msra.mxu0 %v896
    %898 = vmatprep.subr.mxu0 0.0
    %v899 = vand.u32 %v731, 4294901760
    %v900 = vsub.f32 %v731, %v899
    %v901 = vand.u32 %v900, 4294901760
    %v902 = vsub.f32 %v900, %v901
    %v903 = vand.u32 %v902, 4294901760
    %904 = vmatpush1.xpose.msra.mxu0 %v903
    %905 = vmatprep.subr.mxu0 0.0
    %v906 = vand.u32 %v732, 4294901760
    %v907 = vsub.f32 %v732, %v906
    %v908 = vand.u32 %v907, 4294901760
    %v909 = vsub.f32 %v907, %v908
    %v910 = vand.u32 %v909, 4294901760
    %911 = vmatpush1.xpose.msra.mxu0 %v910
    %912 = vmatprep.subr.mxu0 0.0
    %v913 = vand.u32 %v733, 4294901760
    %v914 = vsub.f32 %v733, %v913
    %v915 = vand.u32 %v914, 4294901760
    %v916 = vsub.f32 %v914, %v915
    %v917 = vand.u32 %v916, 4294901760
    %918 = vmatpush1.xpose.msra.mxu0 %v917
    %919 = vmatprep.subr.mxu0 0.0
    %v920 = vand.u32 %v734, 4294901760
    %v921 = vsub.f32 %v734, %v920
    %v922 = vand.u32 %v921, 4294901760
    %v923 = vsub.f32 %v921, %v922
    %v924 = vand.u32 %v923, 4294901760
    %925 = vmatpush1.xpose.msra.mxu0 %v924
    %926 = vmatprep.subr.mxu0 0.0
    %v927 = vand.u32 %v735, 4294901760
    %v928 = vsub.f32 %v735, %v927
    %v929 = vand.u32 %v928, 4294901760
    %v930 = vsub.f32 %v928, %v929
    %v931 = vand.u32 %v930, 4294901760
    %932 = vmatpush1.xpose.msra.mxu0 %v931
    %933 = vmatprep.subr.mxu0 0.0
    %v934 = vand.u32 %v736, 4294901760
    %v935 = vsub.f32 %v736, %v934
    %v936 = vand.u32 %v935, 4294901760
    %v937 = vsub.f32 %v935, %v936
    %v938 = vand.u32 %v937, 4294901760
    %939 = vmatpush1.xpose.msra.mxu0 %v938
    %940 = vmatprep.subr.mxu0 0.0
    %941 = vmatpush1.xpose.msra.mxu0 0.0
    %942 = vmatprep.subr.mxu0 0.0
    %943 = vmatpush1.xpose.msra.mxu0 0.0
    %944 = vmatprep.subr.mxu0 0.0
    %945 = vmatpush1.xpose.msra.mxu0 0.0
    %946 = vmatprep.subr.mxu0 0.0
    %947 = vmatpush1.xpose.msra.mxu0 0.0
    %948 = vmatprep.subr.mxu0 0.0
    %949 = vmatpush1.xpose.msra.mxu0 0.0
    %950 = vmatprep.subr.mxu0 0.0
    %951 = vmatpush1.xpose.msra.mxu0 0.0
    %952 = vmatprep.subr.mxu0 0.0
    %953 = vmatpush1.xpose.msra.mxu0 0.0
    %954 = vmatprep.subr.mxu0 0.0
    %955 = vmatpush1.xpose.msra.mxu0 0.0
    %956 = vmatprep.subr.mxu0 0.0
    %957 = vmatpush1.xpose.msra.mxu0 0.0
    %958 = vmatprep.subr.mxu0 0.0
    %959 = vmatpush1.xpose.msra.mxu0 0.0
    %960 = vmatprep.subr.mxu0 0.0
    %961 = vmatpush1.xpose.msra.mxu0 0.0
    %962 = vmatprep.subr.mxu0 0.0
    %963 = vmatpush1.xpose.msra.mxu0 0.0
    %964 = vmatprep.subr.mxu0 0.0
    %965 = vmatpush1.xpose.msra.mxu0 0.0
    %966 = vmatprep.subr.mxu0 0.0
    %967 = vmatpush1.xpose.msra.mxu0 0.0
    %968 = vmatprep.subr.mxu0 0.0
    %969 = vmatpush1.xpose.msra.mxu0 0.0
    %970 = vmatprep.subr.mxu0 0.0
    %971 = vmatpush1.xpose.msra.mxu0 0.0
    %972 = vmatprep.mubr.f32.mxu0 0.0
    %v973 = vand.u32 %v63, 4294901760
    %974 = vmatmul.mubr.f32.gmra.mrb[0].mxu0 %v973
    %v975 = vpop.f32.mrb[0].mxu0
    %v976 = vadd.f32 %v825, %v975
    %v977 = vpop.f32.mrb[0].mxu0
    %978 = vdwg.mxu0
    %979 = vmatprep.subr.mxu0 0.0
    %v980 = vand.u32 %v721, 4294901760
    %v981 = vsub.f32 %v721, %v980
    %982 = vmatpush1.xpose.msra.mxu0 %v981
    %983 = vmatprep.subr.mxu0 0.0
    %v984 = vand.u32 %v722, 4294901760
    %v985 = vsub.f32 %v722, %v984
    %986 = vmatpush1.xpose.msra.mxu0 %v985
    %987 = vmatprep.subr.mxu0 0.0
    %v988 = vand.u32 %v723, 4294901760
    %v989 = vsub.f32 %v723, %v988
    %990 = vmatpush1.xpose.msra.mxu0 %v989
    %991 = vmatprep.subr.mxu0 0.0
    %v992 = vand.u32 %v724, 4294901760
    %v993 = vsub.f32 %v724, %v992
    %994 = vmatpush1.xpose.msra.mxu0 %v993
    %995 = vmatprep.subr.mxu0 0.0
    %v996 = vand.u32 %v725, 4294901760
    %v997 = vsub.f32 %v725, %v996
    %998 = vmatpush1.xpose.msra.mxu0 %v997
    %999 = vmatprep.subr.mxu0 0.0
    %v1000 = vand.u32 %v726, 4294901760
    %v1001 = vsub.f32 %v726, %v1000
    %1002 = vmatpush1.xpose.msra.mxu0 %v1001
    %1003 = vmatprep.subr.mxu0 0.0
    %v1004 = vand.u32 %v727, 4294901760
    %v1005 = vsub.f32 %v727, %v1004
    %1006 = vmatpush1.xpose.msra.mxu0 %v1005
    %1007 = vmatprep.subr.mxu0 0.0
    %v1008 = vand.u32 %v728, 4294901760
    %v1009 = vsub.f32 %v728, %v1008
    %1010 = vmatpush1.xpose.msra.mxu0 %v1009
    %1011 = vmatprep.subr.mxu0 0.0
    %v1012 = vand.u32 %v729, 4294901760
    %v1013 = vsub.f32 %v729, %v1012
    %1014 = vmatpush1.xpose.msra.mxu0 %v1013
    %1015 = vmatprep.subr.mxu0 0.0
    %v1016 = vand.u32 %v730, 4294901760
    %v1017 = vsub.f32 %v730, %v1016
    %1018 = vmatpush1.xpose.msra.mxu0 %v1017
    %1019 = vmatprep.subr.mxu0 0.0
    %v1020 = vand.u32 %v731, 4294901760
    %v1021 = vsub.f32 %v731, %v1020
    %1022 = vmatpush1.xpose.msra.mxu0 %v1021
    %1023 = vmatprep.subr.mxu0 0.0
    %v1024 = vand.u32 %v732, 4294901760
    %v1025 = vsub.f32 %v732, %v1024
    %1026 = vmatpush1.xpose.msra.mxu0 %v1025
    %1027 = vmatprep.subr.mxu0 0.0
    %v1028 = vand.u32 %v733, 4294901760
    %v1029 = vsub.f32 %v733, %v1028
    %1030 = vmatpush1.xpose.msra.mxu0 %v1029
    %1031 = vmatprep.subr.mxu0 0.0
    %v1032 = vand.u32 %v734, 4294901760
    %v1033 = vsub.f32 %v734, %v1032
    %1034 = vmatpush1.xpose.msra.mxu0 %v1033
    %1035 = vmatprep.subr.mxu0 0.0
    %v1036 = vand.u32 %v735, 4294901760
    %v1037 = vsub.f32 %v735, %v1036
    %1038 = vmatpush1.xpose.msra.mxu0 %v1037
    %1039 = vmatprep.subr.mxu0 0.0
    %v1040 = vand.u32 %v736, 4294901760
    %v1041 = vsub.f32 %v736, %v1040
    %1042 = vmatpush1.xpose.msra.mxu0 %v1041
    %1043 = vmatprep.subr.mxu0 0.0
    %1044 = vmatpush1.xpose.msra.mxu0 0.0
    %1045 = vmatprep.subr.mxu0 0.0
    %1046 = vmatpush1.xpose.msra.mxu0 0.0
    %1047 = vmatprep.subr.mxu0 0.0
    %1048 = vmatpush1.xpose.msra.mxu0 0.0
    %1049 = vmatprep.subr.mxu0 0.0
    %1050 = vmatpush1.xpose.msra.mxu0 0.0
    %1051 = vmatprep.subr.mxu0 0.0
    %1052 = vmatpush1.xpose.msra.mxu0 0.0
    %1053 = vmatprep.subr.mxu0 0.0
    %1054 = vmatpush1.xpose.msra.mxu0 0.0
    %1055 = vmatprep.subr.mxu0 0.0
    %1056 = vmatpush1.xpose.msra.mxu0 0.0
    %1057 = vmatprep.subr.mxu0 0.0
    %1058 = vmatpush1.xpose.msra.mxu0 0.0
    %1059 = vmatprep.subr.mxu0 0.0
    %1060 = vmatpush1.xpose.msra.mxu0 0.0
    %1061 = vmatprep.subr.mxu0 0.0
    %1062 = vmatpush1.xpose.msra.mxu0 0.0
    %1063 = vmatprep.subr.mxu0 0.0
    %1064 = vmatpush1.xpose.msra.mxu0 0.0
    %1065 = vmatprep.subr.mxu0 0.0
    %1066 = vmatpush1.xpose.msra.mxu0 0.0
    %1067 = vmatprep.subr.mxu0 0.0
    %1068 = vmatpush1.xpose.msra.mxu0 0.0
    %1069 = vmatprep.subr.mxu0 0.0
    %1070 = vmatpush1.xpose.msra.mxu0 0.0
    %1071 = vmatprep.subr.mxu0 0.0
    %1072 = vmatpush1.xpose.msra.mxu0 0.0
    %1073 = vmatprep.subr.mxu0 0.0
    %1074 = vmatpush1.xpose.msra.mxu0 0.0
    %1075 = vmatprep.mubr.f32.mxu0 0.0
    %v1076 = vand.u32 %v63, 4294901760
    %v1077 = vsub.f32 %v63, %v1076
    %1078 = vmatmul.mubr.f32.gmra.mrb[0].mxu0 %v1077
    %v1079 = vpop.f32.mrb[0].mxu0
    %v1080 = vadd.f32 %v976, %v1079
    %v1081 = vpop.f32.mrb[0].mxu0
    %1082 = vdwg.mxu0
    %1083 = vmatprep.subr.mxu0 0.0
    %v1084 = vand.u32 %v721, 4294901760
    %1085 = vmatpush1.xpose.msra.mxu0 %v1084
    %1086 = vmatprep.subr.mxu0 0.0
    %v1087 = vand.u32 %v722, 4294901760
    %1088 = vmatpush1.xpose.msra.mxu0 %v1087
    %1089 = vmatprep.subr.mxu0 0.0
    %v1090 = vand.u32 %v723, 4294901760
    %1091 = vmatpush1.xpose.msra.mxu0 %v1090
    %1092 = vmatprep.subr.mxu0 0.0
    %v1093 = vand.u32 %v724, 4294901760
    %1094 = vmatpush1.xpose.msra.mxu0 %v1093
    %1095 = vmatprep.subr.mxu0 0.0
    %v1096 = vand.u32 %v725, 4294901760
    %1097 = vmatpush1.xpose.msra.mxu0 %v1096
    %1098 = vmatprep.subr.mxu0 0.0
    %v1099 = vand.u32 %v726, 4294901760
    %1100 = vmatpush1.xpose.msra.mxu0 %v1099
    %1101 = vmatprep.subr.mxu0 0.0
    %v1102 = vand.u32 %v727, 4294901760
    %1103 = vmatpush1.xpose.msra.mxu0 %v1102
    %1104 = vmatprep.subr.mxu0 0.0
    %v1105 = vand.u32 %v728, 4294901760
    %1106 = vmatpush1.xpose.msra.mxu0 %v1105
    %1107 = vmatprep.subr.mxu0 0.0
    %v1108 = vand.u32 %v729, 4294901760
    %1109 = vmatpush1.xpose.msra.mxu0 %v1108
    %1110 = vmatprep.subr.mxu0 0.0
    %v1111 = vand.u32 %v730, 4294901760
    %1112 = vmatpush1.xpose.msra.mxu0 %v1111
    %1113 = vmatprep.subr.mxu0 0.0
    %v1114 = vand.u32 %v731, 4294901760
    %1115 = vmatpush1.xpose.msra.mxu0 %v1114
    %1116 = vmatprep.subr.mxu0 0.0
    %v1117 = vand.u32 %v732, 4294901760
    %1118 = vmatpush1.xpose.msra.mxu0 %v1117
    %1119 = vmatprep.subr.mxu0 0.0
    %v1120 = vand.u32 %v733, 4294901760
    %1121 = vmatpush1.xpose.msra.mxu0 %v1120
    %1122 = vmatprep.subr.mxu0 0.0
    %v1123 = vand.u32 %v734, 4294901760
    %1124 = vmatpush1.xpose.msra.mxu0 %v1123
    %1125 = vmatprep.subr.mxu0 0.0
    %v1126 = vand.u32 %v735, 4294901760
    %1127 = vmatpush1.xpose.msra.mxu0 %v1126
    %1128 = vmatprep.subr.mxu0 0.0
    %v1129 = vand.u32 %v736, 4294901760
    %1130 = vmatpush1.xpose.msra.mxu0 %v1129
    %1131 = vmatprep.subr.mxu0 0.0
    %1132 = vmatpush1.xpose.msra.mxu0 0.0
    %1133 = vmatprep.subr.mxu0 0.0
    %1134 = vmatpush1.xpose.msra.mxu0 0.0
    %1135 = vmatprep.subr.mxu0 0.0
    %1136 = vmatpush1.xpose.msra.mxu0 0.0
    %1137 = vmatprep.subr.mxu0 0.0
    %1138 = vmatpush1.xpose.msra.mxu0 0.0
    %1139 = vmatprep.subr.mxu0 0.0
    %1140 = vmatpush1.xpose.msra.mxu0 0.0
    %1141 = vmatprep.subr.mxu0 0.0
    %1142 = vmatpush1.xpose.msra.mxu0 0.0
    %1143 = vmatprep.subr.mxu0 0.0
    %1144 = vmatpush1.xpose.msra.mxu0 0.0
    %1145 = vmatprep.subr.mxu0 0.0
    %1146 = vmatpush1.xpose.msra.mxu0 0.0
    %1147 = vmatprep.subr.mxu0 0.0
    %1148 = vmatpush1.xpose.msra.mxu0 0.0
    %1149 = vmatprep.subr.mxu0 0.0
    %1150 = vmatpush1.xpose.msra.mxu0 0.0
    %1151 = vmatprep.subr.mxu0 0.0
    %1152 = vmatpush1.xpose.msra.mxu0 0.0
    %1153 = vmatprep.subr.mxu0 0.0
    %1154 = vmatpush1.xpose.msra.mxu0 0.0
    %1155 = vmatprep.subr.mxu0 0.0
    %1156 = vmatpush1.xpose.msra.mxu0 0.0
    %1157 = vmatprep.subr.mxu0 0.0
    %1158 = vmatpush1.xpose.msra.mxu0 0.0
    %1159 = vmatprep.subr.mxu0 0.0
    %1160 = vmatpush1.xpose.msra.mxu0 0.0
    %1161 = vmatprep.subr.mxu0 0.0
    %1162 = vmatpush1.xpose.msra.mxu0 0.0
    %1163 = vmatprep.mubr.f32.mxu0 0.0
    %v1164 = vand.u32 %v63, 4294901760
    %v1165 = vsub.f32 %v63, %v1164
    %v1166 = vand.u32 %v1165, 4294901760
    %1167 = vmatmul.mubr.f32.gmra.mrb[0].mxu0 %v1166
    %v1168 = vpop.f32.mrb[0].mxu0
    %v1169 = vadd.f32 %v1080, %v1168
    %v1170 = vpop.f32.mrb[0].mxu0
    %1171 = vdwg.mxu0
    %1172 = vmatprep.subr.mxu0 0.0
    %v1173 = vand.u32 %v721, 4294901760
    %v1174 = vsub.f32 %v721, %v1173
    %v1175 = vand.u32 %v1174, 4294901760
    %1176 = vmatpush1.xpose.msra.mxu0 %v1175
    %1177 = vmatprep.subr.mxu0 0.0
    %v1178 = vand.u32 %v722, 4294901760
    %v1179 = vsub.f32 %v722, %v1178
    %v1180 = vand.u32 %v1179, 4294901760
    %1181 = vmatpush1.xpose.msra.mxu0 %v1180
    %1182 = vmatprep.subr.mxu0 0.0
    %v1183 = vand.u32 %v723, 4294901760
    %v1184 = vsub.f32 %v723, %v1183
    %v1185 = vand.u32 %v1184, 4294901760
    %1186 = vmatpush1.xpose.msra.mxu0 %v1185
    %1187 = vmatprep.subr.mxu0 0.0
    %v1188 = vand.u32 %v724, 4294901760
    %v1189 = vsub.f32 %v724, %v1188
    %v1190 = vand.u32 %v1189, 4294901760
    %1191 = vmatpush1.xpose.msra.mxu0 %v1190
    %1192 = vmatprep.subr.mxu0 0.0
    %v1193 = vand.u32 %v725, 4294901760
    %v1194 = vsub.f32 %v725, %v1193
    %v1195 = vand.u32 %v1194, 4294901760
    %1196 = vmatpush1.xpose.msra.mxu0 %v1195
    %1197 = vmatprep.subr.mxu0 0.0
    %v1198 = vand.u32 %v726, 4294901760
    %v1199 = vsub.f32 %v726, %v1198
    %v1200 = vand.u32 %v1199, 4294901760
    %1201 = vmatpush1.xpose.msra.mxu0 %v1200
    %1202 = vmatprep.subr.mxu0 0.0
    %v1203 = vand.u32 %v727, 4294901760
    %v1204 = vsub.f32 %v727, %v1203
    %v1205 = vand.u32 %v1204, 4294901760
    %1206 = vmatpush1.xpose.msra.mxu0 %v1205
    %1207 = vmatprep.subr.mxu0 0.0
    %v1208 = vand.u32 %v728, 4294901760
    %v1209 = vsub.f32 %v728, %v1208
    %v1210 = vand.u32 %v1209, 4294901760
    %1211 = vmatpush1.xpose.msra.mxu0 %v1210
    %1212 = vmatprep.subr.mxu0 0.0
    %v1213 = vand.u32 %v729, 4294901760
    %v1214 = vsub.f32 %v729, %v1213
    %v1215 = vand.u32 %v1214, 4294901760
    %1216 = vmatpush1.xpose.msra.mxu0 %v1215
    %1217 = vmatprep.subr.mxu0 0.0
    %v1218 = vand.u32 %v730, 4294901760
    %v1219 = vsub.f32 %v730, %v1218
    %v1220 = vand.u32 %v1219, 4294901760
    %1221 = vmatpush1.xpose.msra.mxu0 %v1220
    %1222 = vmatprep.subr.mxu0 0.0
    %v1223 = vand.u32 %v731, 4294901760
    %v1224 = vsub.f32 %v731, %v1223
    %v1225 = vand.u32 %v1224, 4294901760
    %1226 = vmatpush1.xpose.msra.mxu0 %v1225
    %1227 = vmatprep.subr.mxu0 0.0
    %v1228 = vand.u32 %v732, 4294901760
    %v1229 = vsub.f32 %v732, %v1228
    %v1230 = vand.u32 %v1229, 4294901760
    %1231 = vmatpush1.xpose.msra.mxu0 %v1230
    %1232 = vmatprep.subr.mxu0 0.0
    %v1233 = vand.u32 %v733, 4294901760
    %v1234 = vsub.f32 %v733, %v1233
    %v1235 = vand.u32 %v1234, 4294901760
    %1236 = vmatpush1.xpose.msra.mxu0 %v1235
    %1237 = vmatprep.subr.mxu0 0.0
    %v1238 = vand.u32 %v734, 4294901760
    %v1239 = vsub.f32 %v734, %v1238
    %v1240 = vand.u32 %v1239, 4294901760
    %1241 = vmatpush1.xpose.msra.mxu0 %v1240
    %1242 = vmatprep.subr.mxu0 0.0
    %v1243 = vand.u32 %v735, 4294901760
    %v1244 = vsub.f32 %v735, %v1243
    %v1245 = vand.u32 %v1244, 4294901760
    %1246 = vmatpush1.xpose.msra.mxu0 %v1245
    %1247 = vmatprep.subr.mxu0 0.0
    %v1248 = vand.u32 %v736, 4294901760
    %v1249 = vsub.f32 %v736, %v1248
    %v1250 = vand.u32 %v1249, 4294901760
    %1251 = vmatpush1.xpose.msra.mxu0 %v1250
    %1252 = vmatprep.subr.mxu0 0.0
    %1253 = vmatpush1.xpose.msra.mxu0 0.0
    %1254 = vmatprep.subr.mxu0 0.0
    %1255 = vmatpush1.xpose.msra.mxu0 0.0
    %1256 = vmatprep.subr.mxu0 0.0
    %1257 = vmatpush1.xpose.msra.mxu0 0.0
    %1258 = vmatprep.subr.mxu0 0.0
    %1259 = vmatpush1.xpose.msra.mxu0 0.0
    %1260 = vmatprep.subr.mxu0 0.0
    %1261 = vmatpush1.xpose.msra.mxu0 0.0
    %1262 = vmatprep.subr.mxu0 0.0
    %1263 = vmatpush1.xpose.msra.mxu0 0.0
    %1264 = vmatprep.subr.mxu0 0.0
    %1265 = vmatpush1.xpose.msra.mxu0 0.0
    %1266 = vmatprep.subr.mxu0 0.0
    %1267 = vmatpush1.xpose.msra.mxu0 0.0
    %1268 = vmatprep.subr.mxu0 0.0
    %1269 = vmatpush1.xpose.msra.mxu0 0.0
    %1270 = vmatprep.subr.mxu0 0.0
    %1271 = vmatpush1.xpose.msra.mxu0 0.0
    %1272 = vmatprep.subr.mxu0 0.0
    %1273 = vmatpush1.xpose.msra.mxu0 0.0
    %1274 = vmatprep.subr.mxu0 0.0
    %1275 = vmatpush1.xpose.msra.mxu0 0.0
    %1276 = vmatprep.subr.mxu0 0.0
    %1277 = vmatpush1.xpose.msra.mxu0 0.0
    %1278 = vmatprep.subr.mxu0 0.0
    %1279 = vmatpush1.xpose.msra.mxu0 0.0
    %1280 = vmatprep.subr.mxu0 0.0
    %1281 = vmatpush1.xpose.msra.mxu0 0.0
    %1282 = vmatprep.subr.mxu0 0.0
    %1283 = vmatpush1.xpose.msra.mxu0 0.0
    %1284 = vmatprep.mubr.f32.mxu0 0.0
    %v1285 = vand.u32 %v63, 4294901760
    %1286 = vmatmul.mubr.f32.gmra.mrb[0].mxu0 %v1285
    %v1287 = vpop.f32.mrb[0].mxu0
    %v1288 = vadd.f32 %v1169, %v1287
    %v1289 = vpop.f32.mrb[0].mxu0
    %1290 = vdwg.mxu0
    %1291 = vmatprep.subr.mxu0 0.0
    %v1292 = vand.u32 %v721, 4294901760
    %1293 = vmatpush1.xpose.msra.mxu0 %v1292
    %1294 = vmatprep.subr.mxu0 0.0
    %v1295 = vand.u32 %v722, 4294901760
    %1296 = vmatpush1.xpose.msra.mxu0 %v1295
    %1297 = vmatprep.subr.mxu0 0.0
    %v1298 = vand.u32 %v723, 4294901760
    %1299 = vmatpush1.xpose.msra.mxu0 %v1298
    %1300 = vmatprep.subr.mxu0 0.0
    %v1301 = vand.u32 %v724, 4294901760
    %1302 = vmatpush1.xpose.msra.mxu0 %v1301
    %1303 = vmatprep.subr.mxu0 0.0
    %v1304 = vand.u32 %v725, 4294901760
    %1305 = vmatpush1.xpose.msra.mxu0 %v1304
    %1306 = vmatprep.subr.mxu0 0.0
    %v1307 = vand.u32 %v726, 4294901760
    %1308 = vmatpush1.xpose.msra.mxu0 %v1307
    %1309 = vmatprep.subr.mxu0 0.0
    %v1310 = vand.u32 %v727, 4294901760
    %1311 = vmatpush1.xpose.msra.mxu0 %v1310
    %1312 = vmatprep.subr.mxu0 0.0
    %v1313 = vand.u32 %v728, 4294901760
    %1314 = vmatpush1.xpose.msra.mxu0 %v1313
    %1315 = vmatprep.subr.mxu0 0.0
    %v1316 = vand.u32 %v729, 4294901760
    %1317 = vmatpush1.xpose.msra.mxu0 %v1316
    %1318 = vmatprep.subr.mxu0 0.0
    %v1319 = vand.u32 %v730, 4294901760
    %1320 = vmatpush1.xpose.msra.mxu0 %v1319
    %1321 = vmatprep.subr.mxu0 0.0
    %v1322 = vand.u32 %v731, 4294901760
    %1323 = vmatpush1.xpose.msra.mxu0 %v1322
    %1324 = vmatprep.subr.mxu0 0.0
    %v1325 = vand.u32 %v732, 4294901760
    %1326 = vmatpush1.xpose.msra.mxu0 %v1325
    %1327 = vmatprep.subr.mxu0 0.0
    %v1328 = vand.u32 %v733, 4294901760
    %1329 = vmatpush1.xpose.msra.mxu0 %v1328
    %1330 = vmatprep.subr.mxu0 0.0
    %v1331 = vand.u32 %v734, 4294901760
    %1332 = vmatpush1.xpose.msra.mxu0 %v1331
    %1333 = vmatprep.subr.mxu0 0.0
    %v1334 = vand.u32 %v735, 4294901760
    %1335 = vmatpush1.xpose.msra.mxu0 %v1334
    %1336 = vmatprep.subr.mxu0 0.0
    %v1337 = vand.u32 %v736, 4294901760
    %1338 = vmatpush1.xpose.msra.mxu0 %v1337
    %1339 = vmatprep.subr.mxu0 0.0
    %1340 = vmatpush1.xpose.msra.mxu0 0.0
    %1341 = vmatprep.subr.mxu0 0.0
    %1342 = vmatpush1.xpose.msra.mxu0 0.0
    %1343 = vmatprep.subr.mxu0 0.0
    %1344 = vmatpush1.xpose.msra.mxu0 0.0
    %1345 = vmatprep.subr.mxu0 0.0
    %1346 = vmatpush1.xpose.msra.mxu0 0.0
    %1347 = vmatprep.subr.mxu0 0.0
    %1348 = vmatpush1.xpose.msra.mxu0 0.0
    %1349 = vmatprep.subr.mxu0 0.0
    %1350 = vmatpush1.xpose.msra.mxu0 0.0
    %1351 = vmatprep.subr.mxu0 0.0
    %1352 = vmatpush1.xpose.msra.mxu0 0.0
    %1353 = vmatprep.subr.mxu0 0.0
    %1354 = vmatpush1.xpose.msra.mxu0 0.0
    %1355 = vmatprep.subr.mxu0 0.0
    %1356 = vmatpush1.xpose.msra.mxu0 0.0
    %1357 = vmatprep.subr.mxu0 0.0
    %1358 = vmatpush1.xpose.msra.mxu0 0.0
    %1359 = vmatprep.subr.mxu0 0.0
    %1360 = vmatpush1.xpose.msra.mxu0 0.0
    %1361 = vmatprep.subr.mxu0 0.0
    %1362 = vmatpush1.xpose.msra.mxu0 0.0
    %1363 = vmatprep.subr.mxu0 0.0
    %1364 = vmatpush1.xpose.msra.mxu0 0.0
    %1365 = vmatprep.subr.mxu0 0.0
    %1366 = vmatpush1.xpose.msra.mxu0 0.0
    %1367 = vmatprep.subr.mxu0 0.0
    %1368 = vmatpush1.xpose.msra.mxu0 0.0
    %1369 = vmatprep.subr.mxu0 0.0
    %1370 = vmatpush1.xpose.msra.mxu0 0.0
    %1371 = vmatprep.mubr.f32.mxu0 0.0
    %v1372 = vand.u32 %v63, 4294901760
    %1373 = vmatmul.mubr.f32.gmra.mrb[0].mxu0 %v1372
    %v1374 = vpop.f32.mrb[0].mxu0
    %v1375 = vadd.f32 %v1288, %v1374
    %v1376 = vpop.f32.mrb[0].mxu0
    %1377 = vdwg.mxu0
    %v1378 = vmul.f32 %v47, %v47
    %v1379 = vmul.f32 %v48, %v48
    %v1380 = vmul.f32 %v49, %v49
    %v1381 = vmul.f32 %v50, %v50
    %v1382 = vmul.f32 %v51, %v51
    %v1383 = vmul.f32 %v52, %v52
    %v1384 = vmul.f32 %v53, %v53
    %v1385 = vmul.f32 %v54, %v54
    %v1386 = vmul.f32 %v55, %v55
    %v1387 = vmul.f32 %v56, %v56
    %v1388 = vmul.f32 %v57, %v57
    %v1389 = vmul.f32 %v58, %v58
    %v1390 = vmul.f32 %v59, %v59
    %v1391 = vmul.f32 %v60, %v60
    %v1392 = vmul.f32 %v61, %v61
    %v1393 = vmul.f32 %v62, %v62
    %1394 = vmatprep.subr.mxu0 0.0
    %v1395 = vand.u32 %v1378, 4294901760
    %1396 = vmatpush1.xpose.msra.mxu0 %v1395
    %1397 = vmatprep.subr.mxu0 0.0
    %v1398 = vand.u32 %v1379, 4294901760
    %1399 = vmatpush1.xpose.msra.mxu0 %v1398
    %1400 = vmatprep.subr.mxu0 0.0
    %v1401 = vand.u32 %v1380, 4294901760
    %1402 = vmatpush1.xpose.msra.mxu0 %v1401
    %1403 = vmatprep.subr.mxu0 0.0
    %v1404 = vand.u32 %v1381, 4294901760
    %1405 = vmatpush1.xpose.msra.mxu0 %v1404
    %1406 = vmatprep.subr.mxu0 0.0
    %v1407 = vand.u32 %v1382, 4294901760
    %1408 = vmatpush1.xpose.msra.mxu0 %v1407
    %1409 = vmatprep.subr.mxu0 0.0
    %v1410 = vand.u32 %v1383, 4294901760
    %1411 = vmatpush1.xpose.msra.mxu0 %v1410
    %1412 = vmatprep.subr.mxu0 0.0
    %v1413 = vand.u32 %v1384, 4294901760
    %1414 = vmatpush1.xpose.msra.mxu0 %v1413
    %1415 = vmatprep.subr.mxu0 0.0
    %v1416 = vand.u32 %v1385, 4294901760
    %1417 = vmatpush1.xpose.msra.mxu0 %v1416
    %1418 = vmatprep.subr.mxu0 0.0
    %v1419 = vand.u32 %v1386, 4294901760
    %1420 = vmatpush1.xpose.msra.mxu0 %v1419
    %1421 = vmatprep.subr.mxu0 0.0
    %v1422 = vand.u32 %v1387, 4294901760
    %1423 = vmatpush1.xpose.msra.mxu0 %v1422
    %1424 = vmatprep.subr.mxu0 0.0
    %v1425 = vand.u32 %v1388, 4294901760
    %1426 = vmatpush1.xpose.msra.mxu0 %v1425
    %1427 = vmatprep.subr.mxu0 0.0
    %v1428 = vand.u32 %v1389, 4294901760
    %1429 = vmatpush1.xpose.msra.mxu0 %v1428
    %1430 = vmatprep.subr.mxu0 0.0
    %v1431 = vand.u32 %v1390, 4294901760
    %1432 = vmatpush1.xpose.msra.mxu0 %v1431
    %1433 = vmatprep.subr.mxu0 0.0
    %v1434 = vand.u32 %v1391, 4294901760
    %1435 = vmatpush1.xpose.msra.mxu0 %v1434
    %1436 = vmatprep.subr.mxu0 0.0
    %v1437 = vand.u32 %v1392, 4294901760
    %1438 = vmatpush1.xpose.msra.mxu0 %v1437
    %1439 = vmatprep.subr.mxu0 0.0
    %v1440 = vand.u32 %v1393, 4294901760
    %1441 = vmatpush1.xpose.msra.mxu0 %v1440
    %1442 = vmatprep.subr.mxu0 0.0
    %1443 = vmatpush1.xpose.msra.mxu0 0.0
    %1444 = vmatprep.subr.mxu0 0.0
    %1445 = vmatpush1.xpose.msra.mxu0 0.0
    %1446 = vmatprep.subr.mxu0 0.0
    %1447 = vmatpush1.xpose.msra.mxu0 0.0
    %1448 = vmatprep.subr.mxu0 0.0
    %1449 = vmatpush1.xpose.msra.mxu0 0.0
    %1450 = vmatprep.subr.mxu0 0.0
    %1451 = vmatpush1.xpose.msra.mxu0 0.0
    %1452 = vmatprep.subr.mxu0 0.0
    %1453 = vmatpush1.xpose.msra.mxu0 0.0
    %1454 = vmatprep.subr.mxu0 0.0
    %1455 = vmatpush1.xpose.msra.mxu0 0.0
    %1456 = vmatprep.subr.mxu0 0.0
    %1457 = vmatpush1.xpose.msra.mxu0 0.0
    %1458 = vmatprep.subr.mxu0 0.0
    %1459 = vmatpush1.xpose.msra.mxu0 0.0
    %1460 = vmatprep.subr.mxu0 0.0
    %1461 = vmatpush1.xpose.msra.mxu0 0.0
    %1462 = vmatprep.subr.mxu0 0.0
    %1463 = vmatpush1.xpose.msra.mxu0 0.0
    %1464 = vmatprep.subr.mxu0 0.0
    %1465 = vmatpush1.xpose.msra.mxu0 0.0
    %1466 = vmatprep.subr.mxu0 0.0
    %1467 = vmatpush1.xpose.msra.mxu0 0.0
    %1468 = vmatprep.subr.mxu0 0.0
    %1469 = vmatpush1.xpose.msra.mxu0 0.0
    %1470 = vmatprep.subr.mxu0 0.0
    %1471 = vmatpush1.xpose.msra.mxu0 0.0
    %1472 = vmatprep.subr.mxu0 0.0
    %1473 = vmatpush1.xpose.msra.mxu0 0.0
    %1474 = vmatprep.mubr.f32.mxu0 0.0
    %v1475 = vand.u32 %v63, 4294901760
    %v1476 = vsub.f32 %v63, %v1475
    %v1477 = vand.u32 %v1476, 4294901760
    %v1478 = vsub.f32 %v1476, %v1477
    %v1479 = vand.u32 %v1478, 4294901760
    %1480 = vmatmul.mubr.f32.gmra.mrb[0].mxu0 %v1479
    %v1481 = vpop.f32.mrb[0].mxu0
    %v1482 = vadd.f32 0.0, %v1481
    %v1483 = vpop.f32.mrb[0].mxu0
    %1484 = vdwg.mxu0
    %1485 = vmatprep.subr.mxu0 0.0
    %v1486 = vand.u32 %v1378, 4294901760
    %v1487 = vsub.f32 %v1378, %v1486
    %v1488 = vand.u32 %v1487, 4294901760
    %v1489 = vsub.f32 %v1487, %v1488
    %v1490 = vand.u32 %v1489, 4294901760
    %1491 = vmatpush1.xpose.msra.mxu0 %v1490
    %1492 = vmatprep.subr.mxu0 0.0
    %v1493 = vand.u32 %v1379, 4294901760
    %v1494 = vsub.f32 %v1379, %v1493
    %v1495 = vand.u32 %v1494, 4294901760
    %v1496 = vsub.f32 %v1494, %v1495
    %v1497 = vand.u32 %v1496, 4294901760
    %1498 = vmatpush1.xpose.msra.mxu0 %v1497
    %1499 = vmatprep.subr.mxu0 0.0
    %v1500 = vand.u32 %v1380, 4294901760
    %v1501 = vsub.f32 %v1380, %v1500
    %v1502 = vand.u32 %v1501, 4294901760
    %v1503 = vsub.f32 %v1501, %v1502
    %v1504 = vand.u32 %v1503, 4294901760
    %1505 = vmatpush1.xpose.msra.mxu0 %v1504
    %1506 = vmatprep.subr.mxu0 0.0
    %v1507 = vand.u32 %v1381, 4294901760
    %v1508 = vsub.f32 %v1381, %v1507
    %v1509 = vand.u32 %v1508, 4294901760
    %v1510 = vsub.f32 %v1508, %v1509
    %v1511 = vand.u32 %v1510, 4294901760
    %1512 = vmatpush1.xpose.msra.mxu0 %v1511
    %1513 = vmatprep.subr.mxu0 0.0
    %v1514 = vand.u32 %v1382, 4294901760
    %v1515 = vsub.f32 %v1382, %v1514
    %v1516 = vand.u32 %v1515, 4294901760
    %v1517 = vsub.f32 %v1515, %v1516
    %v1518 = vand.u32 %v1517, 4294901760
    %1519 = vmatpush1.xpose.msra.mxu0 %v1518
    %1520 = vmatprep.subr.mxu0 0.0
    %v1521 = vand.u32 %v1383, 4294901760
    %v1522 = vsub.f32 %v1383, %v1521
    %v1523 = vand.u32 %v1522, 4294901760
    %v1524 = vsub.f32 %v1522, %v1523
    %v1525 = vand.u32 %v1524, 4294901760
    %1526 = vmatpush1.xpose.msra.mxu0 %v1525
    %1527 = vmatprep.subr.mxu0 0.0
    %v1528 = vand.u32 %v1384, 4294901760
    %v1529 = vsub.f32 %v1384, %v1528
    %v1530 = vand.u32 %v1529, 4294901760
    %v1531 = vsub.f32 %v1529, %v1530
    %v1532 = vand.u32 %v1531, 4294901760
    %1533 = vmatpush1.xpose.msra.mxu0 %v1532
    %1534 = vmatprep.subr.mxu0 0.0
    %v1535 = vand.u32 %v1385, 4294901760
    %v1536 = vsub.f32 %v1385, %v1535
    %v1537 = vand.u32 %v1536, 4294901760
    %v1538 = vsub.f32 %v1536, %v1537
    %v1539 = vand.u32 %v1538, 4294901760
    %1540 = vmatpush1.xpose.msra.mxu0 %v1539
    %1541 = vmatprep.subr.mxu0 0.0
    %v1542 = vand.u32 %v1386, 4294901760
    %v1543 = vsub.f32 %v1386, %v1542
    %v1544 = vand.u32 %v1543, 4294901760
    %v1545 = vsub.f32 %v1543, %v1544
    %v1546 = vand.u32 %v1545, 4294901760
    %1547 = vmatpush1.xpose.msra.mxu0 %v1546
    %1548 = vmatprep.subr.mxu0 0.0
    %v1549 = vand.u32 %v1387, 4294901760
    %v1550 = vsub.f32 %v1387, %v1549
    %v1551 = vand.u32 %v1550, 4294901760
    %v1552 = vsub.f32 %v1550, %v1551
    %v1553 = vand.u32 %v1552, 4294901760
    %1554 = vmatpush1.xpose.msra.mxu0 %v1553
    %1555 = vmatprep.subr.mxu0 0.0
    %v1556 = vand.u32 %v1388, 4294901760
    %v1557 = vsub.f32 %v1388, %v1556
    %v1558 = vand.u32 %v1557, 4294901760
    %v1559 = vsub.f32 %v1557, %v1558
    %v1560 = vand.u32 %v1559, 4294901760
    %1561 = vmatpush1.xpose.msra.mxu0 %v1560
    %1562 = vmatprep.subr.mxu0 0.0
    %v1563 = vand.u32 %v1389, 4294901760
    %v1564 = vsub.f32 %v1389, %v1563
    %v1565 = vand.u32 %v1564, 4294901760
    %v1566 = vsub.f32 %v1564, %v1565
    %v1567 = vand.u32 %v1566, 4294901760
    %1568 = vmatpush1.xpose.msra.mxu0 %v1567
    %1569 = vmatprep.subr.mxu0 0.0
    %v1570 = vand.u32 %v1390, 4294901760
    %v1571 = vsub.f32 %v1390, %v1570
    %v1572 = vand.u32 %v1571, 4294901760
    %v1573 = vsub.f32 %v1571, %v1572
    %v1574 = vand.u32 %v1573, 4294901760
    %1575 = vmatpush1.xpose.msra.mxu0 %v1574
    %1576 = vmatprep.subr.mxu0 0.0
    %v1577 = vand.u32 %v1391, 4294901760
    %v1578 = vsub.f32 %v1391, %v1577
    %v1579 = vand.u32 %v1578, 4294901760
    %v1580 = vsub.f32 %v1578, %v1579
    %v1581 = vand.u32 %v1580, 4294901760
    %1582 = vmatpush1.xpose.msra.mxu0 %v1581
    %1583 = vmatprep.subr.mxu0 0.0
    %v1584 = vand.u32 %v1392, 4294901760
    %v1585 = vsub.f32 %v1392, %v1584
    %v1586 = vand.u32 %v1585, 4294901760
    %v1587 = vsub.f32 %v1585, %v1586
    %v1588 = vand.u32 %v1587, 4294901760
    %1589 = vmatpush1.xpose.msra.mxu0 %v1588
    %1590 = vmatprep.subr.mxu0 0.0
    %v1591 = vand.u32 %v1393, 4294901760
    %v1592 = vsub.f32 %v1393, %v1591
    %v1593 = vand.u32 %v1592, 4294901760
    %v1594 = vsub.f32 %v1592, %v1593
    %v1595 = vand.u32 %v1594, 4294901760
    %1596 = vmatpush1.xpose.msra.mxu0 %v1595
    %1597 = vmatprep.subr.mxu0 0.0
    %1598 = vmatpush1.xpose.msra.mxu0 0.0
    %1599 = vmatprep.subr.mxu0 0.0
    %1600 = vmatpush1.xpose.msra.mxu0 0.0
    %1601 = vmatprep.subr.mxu0 0.0
    %1602 = vmatpush1.xpose.msra.mxu0 0.0
    %1603 = vmatprep.subr.mxu0 0.0
    %1604 = vmatpush1.xpose.msra.mxu0 0.0
    %1605 = vmatprep.subr.mxu0 0.0
    %1606 = vmatpush1.xpose.msra.mxu0 0.0
    %1607 = vmatprep.subr.mxu0 0.0
    %1608 = vmatpush1.xpose.msra.mxu0 0.0
    %1609 = vmatprep.subr.mxu0 0.0
    %1610 = vmatpush1.xpose.msra.mxu0 0.0
    %1611 = vmatprep.subr.mxu0 0.0
    %1612 = vmatpush1.xpose.msra.mxu0 0.0
    %1613 = vmatprep.subr.mxu0 0.0
    %1614 = vmatpush1.xpose.msra.mxu0 0.0
    %1615 = vmatprep.subr.mxu0 0.0
    %1616 = vmatpush1.xpose.msra.mxu0 0.0
    %1617 = vmatprep.subr.mxu0 0.0
    %1618 = vmatpush1.xpose.msra.mxu0 0.0
    %1619 = vmatprep.subr.mxu0 0.0
    %1620 = vmatpush1.xpose.msra.mxu0 0.0
    %1621 = vmatprep.subr.mxu0 0.0
    %1622 = vmatpush1.xpose.msra.mxu0 0.0
    %1623 = vmatprep.subr.mxu0 0.0
    %1624 = vmatpush1.xpose.msra.mxu0 0.0
    %1625 = vmatprep.subr.mxu0 0.0
    %1626 = vmatpush1.xpose.msra.mxu0 0.0
    %1627 = vmatprep.subr.mxu0 0.0
    %1628 = vmatpush1.xpose.msra.mxu0 0.0
    %1629 = vmatprep.mubr.f32.mxu0 0.0
    %v1630 = vand.u32 %v63, 4294901760
    %1631 = vmatmul.mubr.f32.gmra.mrb[0].mxu0 %v1630
    %v1632 = vpop.f32.mrb[0].mxu0
    %v1633 = vadd.f32 %v1482, %v1632
    %v1634 = vpop.f32.mrb[0].mxu0
    %1635 = vdwg.mxu0
    %1636 = vmatprep.subr.mxu0 0.0
    %v1637 = vand.u32 %v1378, 4294901760
    %v1638 = vsub.f32 %v1378, %v1637
    %1639 = vmatpush1.xpose.msra.mxu0 %v1638
    %1640 = vmatprep.subr.mxu0 0.0
    %v1641 = vand.u32 %v1379, 4294901760
    %v1642 = vsub.f32 %v1379, %v1641
    %1643 = vmatpush1.xpose.msra.mxu0 %v1642
    %1644 = vmatprep.subr.mxu0 0.0
    %v1645 = vand.u32 %v1380, 4294901760
    %v1646 = vsub.f32 %v1380, %v1645
    %1647 = vmatpush1.xpose.msra.mxu0 %v1646
    %1648 = vmatprep.subr.mxu0 0.0
    %v1649 = vand.u32 %v1381, 4294901760
    %v1650 = vsub.f32 %v1381, %v1649
    %1651 = vmatpush1.xpose.msra.mxu0 %v1650
    %1652 = vmatprep.subr.mxu0 0.0
    %v1653 = vand.u32 %v1382, 4294901760
    %v1654 = vsub.f32 %v1382, %v1653
    %1655 = vmatpush1.xpose.msra.mxu0 %v1654
    %1656 = vmatprep.subr.mxu0 0.0
    %v1657 = vand.u32 %v1383, 4294901760
    %v1658 = vsub.f32 %v1383, %v1657
    %1659 = vmatpush1.xpose.msra.mxu0 %v1658
    %1660 = vmatprep.subr.mxu0 0.0
    %v1661 = vand.u32 %v1384, 4294901760
    %v1662 = vsub.f32 %v1384, %v1661
    %1663 = vmatpush1.xpose.msra.mxu0 %v1662
    %1664 = vmatprep.subr.mxu0 0.0
    %v1665 = vand.u32 %v1385, 4294901760
    %v1666 = vsub.f32 %v1385, %v1665
    %1667 = vmatpush1.xpose.msra.mxu0 %v1666
    %1668 = vmatprep.subr.mxu0 0.0
    %v1669 = vand.u32 %v1386, 4294901760
    %v1670 = vsub.f32 %v1386, %v1669
    %1671 = vmatpush1.xpose.msra.mxu0 %v1670
    %1672 = vmatprep.subr.mxu0 0.0
    %v1673 = vand.u32 %v1387, 4294901760
    %v1674 = vsub.f32 %v1387, %v1673
    %1675 = vmatpush1.xpose.msra.mxu0 %v1674
    %1676 = vmatprep.subr.mxu0 0.0
    %v1677 = vand.u32 %v1388, 4294901760
    %v1678 = vsub.f32 %v1388, %v1677
    %1679 = vmatpush1.xpose.msra.mxu0 %v1678
    %1680 = vmatprep.subr.mxu0 0.0
    %v1681 = vand.u32 %v1389, 4294901760
    %v1682 = vsub.f32 %v1389, %v1681
    %1683 = vmatpush1.xpose.msra.mxu0 %v1682
    %1684 = vmatprep.subr.mxu0 0.0
    %v1685 = vand.u32 %v1390, 4294901760
    %v1686 = vsub.f32 %v1390, %v1685
    %1687 = vmatpush1.xpose.msra.mxu0 %v1686
    %1688 = vmatprep.subr.mxu0 0.0
    %v1689 = vand.u32 %v1391, 4294901760
    %v1690 = vsub.f32 %v1391, %v1689
    %1691 = vmatpush1.xpose.msra.mxu0 %v1690
    %1692 = vmatprep.subr.mxu0 0.0
    %v1693 = vand.u32 %v1392, 4294901760
    %v1694 = vsub.f32 %v1392, %v1693
    %1695 = vmatpush1.xpose.msra.mxu0 %v1694
    %1696 = vmatprep.subr.mxu0 0.0
    %v1697 = vand.u32 %v1393, 4294901760
    %v1698 = vsub.f32 %v1393, %v1697
    %1699 = vmatpush1.xpose.msra.mxu0 %v1698
    %1700 = vmatprep.subr.mxu0 0.0
    %1701 = vmatpush1.xpose.msra.mxu0 0.0
    %1702 = vmatprep.subr.mxu0 0.0
    %1703 = vmatpush1.xpose.msra.mxu0 0.0
    %1704 = vmatprep.subr.mxu0 0.0
    %1705 = vmatpush1.xpose.msra.mxu0 0.0
    %1706 = vmatprep.subr.mxu0 0.0
    %1707 = vmatpush1.xpose.msra.mxu0 0.0
    %1708 = vmatprep.subr.mxu0 0.0
    %1709 = vmatpush1.xpose.msra.mxu0 0.0
    %1710 = vmatprep.subr.mxu0 0.0
    %1711 = vmatpush1.xpose.msra.mxu0 0.0
    %1712 = vmatprep.subr.mxu0 0.0
    %1713 = vmatpush1.xpose.msra.mxu0 0.0
    %1714 = vmatprep.subr.mxu0 0.0
    %1715 = vmatpush1.xpose.msra.mxu0 0.0
    %1716 = vmatprep.subr.mxu0 0.0
    %1717 = vmatpush1.xpose.msra.mxu0 0.0
    %1718 = vmatprep.subr.mxu0 0.0
    %1719 = vmatpush1.xpose.msra.mxu0 0.0
    %1720 = vmatprep.subr.mxu0 0.0
    %1721 = vmatpush1.xpose.msra.mxu0 0.0
    %1722 = vmatprep.subr.mxu0 0.0
    %1723 = vmatpush1.xpose.msra.mxu0 0.0
    %1724 = vmatprep.subr.mxu0 0.0
    %1725 = vmatpush1.xpose.msra.mxu0 0.0
    %1726 = vmatprep.subr.mxu0 0.0
    %1727 = vmatpush1.xpose.msra.mxu0 0.0
    %1728 = vmatprep.subr.mxu0 0.0
    %1729 = vmatpush1.xpose.msra.mxu0 0.0
    %1730 = vmatprep.subr.mxu0 0.0
    %1731 = vmatpush1.xpose.msra.mxu0 0.0
    %1732 = vmatprep.mubr.f32.mxu0 0.0
    %v1733 = vand.u32 %v63, 4294901760
    %v1734 = vsub.f32 %v63, %v1733
    %1735 = vmatmul.mubr.f32.gmra.mrb[0].mxu0 %v1734
    %v1736 = vpop.f32.mrb[0].mxu0
    %v1737 = vadd.f32 %v1633, %v1736
    %v1738 = vpop.f32.mrb[0].mxu0
    %1739 = vdwg.mxu0
    %1740 = vmatprep.subr.mxu0 0.0
    %v1741 = vand.u32 %v1378, 4294901760
    %1742 = vmatpush1.xpose.msra.mxu0 %v1741
    %1743 = vmatprep.subr.mxu0 0.0
    %v1744 = vand.u32 %v1379, 4294901760
    %1745 = vmatpush1.xpose.msra.mxu0 %v1744
    %1746 = vmatprep.subr.mxu0 0.0
    %v1747 = vand.u32 %v1380, 4294901760
    %1748 = vmatpush1.xpose.msra.mxu0 %v1747
    %1749 = vmatprep.subr.mxu0 0.0
    %v1750 = vand.u32 %v1381, 4294901760
    %1751 = vmatpush1.xpose.msra.mxu0 %v1750
    %1752 = vmatprep.subr.mxu0 0.0
    %v1753 = vand.u32 %v1382, 4294901760
    %1754 = vmatpush1.xpose.msra.mxu0 %v1753
    %1755 = vmatprep.subr.mxu0 0.0
    %v1756 = vand.u32 %v1383, 4294901760
    %1757 = vmatpush1.xpose.msra.mxu0 %v1756
    %1758 = vmatprep.subr.mxu0 0.0
    %v1759 = vand.u32 %v1384, 4294901760
    %1760 = vmatpush1.xpose.msra.mxu0 %v1759
    %1761 = vmatprep.subr.mxu0 0.0
    %v1762 = vand.u32 %v1385, 4294901760
    %1763 = vmatpush1.xpose.msra.mxu0 %v1762
    %1764 = vmatprep.subr.mxu0 0.0
    %v1765 = vand.u32 %v1386, 4294901760
    %1766 = vmatpush1.xpose.msra.mxu0 %v1765
    %1767 = vmatprep.subr.mxu0 0.0
    %v1768 = vand.u32 %v1387, 4294901760
    %1769 = vmatpush1.xpose.msra.mxu0 %v1768
    %1770 = vmatprep.subr.mxu0 0.0
    %v1771 = vand.u32 %v1388, 4294901760
    %1772 = vmatpush1.xpose.msra.mxu0 %v1771
    %1773 = vmatprep.subr.mxu0 0.0
    %v1774 = vand.u32 %v1389, 4294901760
    %1775 = vmatpush1.xpose.msra.mxu0 %v1774
    %1776 = vmatprep.subr.mxu0 0.0
    %v1777 = vand.u32 %v1390, 4294901760
    %1778 = vmatpush1.xpose.msra.mxu0 %v1777
    %1779 = vmatprep.subr.mxu0 0.0
    %v1780 = vand.u32 %v1391, 4294901760
    %1781 = vmatpush1.xpose.msra.mxu0 %v1780
    %1782 = vmatprep.subr.mxu0 0.0
    %v1783 = vand.u32 %v1392, 4294901760
    %1784 = vmatpush1.xpose.msra.mxu0 %v1783
    %1785 = vmatprep.subr.mxu0 0.0
    %v1786 = vand.u32 %v1393, 4294901760
    %1787 = vmatpush1.xpose.msra.mxu0 %v1786
    %1788 = vmatprep.subr.mxu0 0.0
    %1789 = vmatpush1.xpose.msra.mxu0 0.0
    %1790 = vmatprep.subr.mxu0 0.0
    %1791 = vmatpush1.xpose.msra.mxu0 0.0
    %1792 = vmatprep.subr.mxu0 0.0
    %1793 = vmatpush1.xpose.msra.mxu0 0.0
    %1794 = vmatprep.subr.mxu0 0.0
    %1795 = vmatpush1.xpose.msra.mxu0 0.0
    %1796 = vmatprep.subr.mxu0 0.0
    %1797 = vmatpush1.xpose.msra.mxu0 0.0
    %1798 = vmatprep.subr.mxu0 0.0
    %1799 = vmatpush1.xpose.msra.mxu0 0.0
    %1800 = vmatprep.subr.mxu0 0.0
    %1801 = vmatpush1.xpose.msra.mxu0 0.0
    %1802 = vmatprep.subr.mxu0 0.0
    %1803 = vmatpush1.xpose.msra.mxu0 0.0
    %1804 = vmatprep.subr.mxu0 0.0
    %1805 = vmatpush1.xpose.msra.mxu0 0.0
    %1806 = vmatprep.subr.mxu0 0.0
    %1807 = vmatpush1.xpose.msra.mxu0 0.0
    %1808 = vmatprep.subr.mxu0 0.0
    %1809 = vmatpush1.xpose.msra.mxu0 0.0
    %1810 = vmatprep.subr.mxu0 0.0
    %1811 = vmatpush1.xpose.msra.mxu0 0.0
    %1812 = vmatprep.subr.mxu0 0.0
    %1813 = vmatpush1.xpose.msra.mxu0 0.0
    %1814 = vmatprep.subr.mxu0 0.0
    %1815 = vmatpush1.xpose.msra.mxu0 0.0
    %1816 = vmatprep.subr.mxu0 0.0
    %1817 = vmatpush1.xpose.msra.mxu0 0.0
    %1818 = vmatprep.subr.mxu0 0.0
    %1819 = vmatpush1.xpose.msra.mxu0 0.0
    %1820 = vmatprep.mubr.f32.mxu0 0.0
    %v1821 = vand.u32 %v63, 4294901760
    %v1822 = vsub.f32 %v63, %v1821
    %v1823 = vand.u32 %v1822, 4294901760
    %1824 = vmatmul.mubr.f32.gmra.mrb[0].mxu0 %v1823
    %v1825 = vpop.f32.mrb[0].mxu0
    %v1826 = vadd.f32 %v1737, %v1825
    %v1827 = vpop.f32.mrb[0].mxu0
    %1828 = vdwg.mxu0
    %1829 = vmatprep.subr.mxu0 0.0
    %v1830 = vand.u32 %v1378, 4294901760
    %v1831 = vsub.f32 %v1378, %v1830
    %v1832 = vand.u32 %v1831, 4294901760
    %1833 = vmatpush1.xpose.msra.mxu0 %v1832
    %1834 = vmatprep.subr.mxu0 0.0
    %v1835 = vand.u32 %v1379, 4294901760
    %v1836 = vsub.f32 %v1379, %v1835
    %v1837 = vand.u32 %v1836, 4294901760
    %1838 = vmatpush1.xpose.msra.mxu0 %v1837
    %1839 = vmatprep.subr.mxu0 0.0
    %v1840 = vand.u32 %v1380, 4294901760
    %v1841 = vsub.f32 %v1380, %v1840
    %v1842 = vand.u32 %v1841, 4294901760
    %1843 = vmatpush1.xpose.msra.mxu0 %v1842
    %1844 = vmatprep.subr.mxu0 0.0
    %v1845 = vand.u32 %v1381, 4294901760
    %v1846 = vsub.f32 %v1381, %v1845
    %v1847 = vand.u32 %v1846, 4294901760
    %1848 = vmatpush1.xpose.msra.mxu0 %v1847
    %1849 = vmatprep.subr.mxu0 0.0
    %v1850 = vand.u32 %v1382, 4294901760
    %v1851 = vsub.f32 %v1382, %v1850
    %v1852 = vand.u32 %v1851, 4294901760
    %1853 = vmatpush1.xpose.msra.mxu0 %v1852
    %1854 = vmatprep.subr.mxu0 0.0
    %v1855 = vand.u32 %v1383, 4294901760
    %v1856 = vsub.f32 %v1383, %v1855
    %v1857 = vand.u32 %v1856, 4294901760
    %1858 = vmatpush1.xpose.msra.mxu0 %v1857
    %1859 = vmatprep.subr.mxu0 0.0
    %v1860 = vand.u32 %v1384, 4294901760
    %v1861 = vsub.f32 %v1384, %v1860
    %v1862 = vand.u32 %v1861, 4294901760
    %1863 = vmatpush1.xpose.msra.mxu0 %v1862
    %1864 = vmatprep.subr.mxu0 0.0
    %v1865 = vand.u32 %v1385, 4294901760
    %v1866 = vsub.f32 %v1385, %v1865
    %v1867 = vand.u32 %v1866, 4294901760
    %1868 = vmatpush1.xpose.msra.mxu0 %v1867
    %1869 = vmatprep.subr.mxu0 0.0
    %v1870 = vand.u32 %v1386, 4294901760
    %v1871 = vsub.f32 %v1386, %v1870
    %v1872 = vand.u32 %v1871, 4294901760
    %1873 = vmatpush1.xpose.msra.mxu0 %v1872
    %1874 = vmatprep.subr.mxu0 0.0
    %v1875 = vand.u32 %v1387, 4294901760
    %v1876 = vsub.f32 %v1387, %v1875
    %v1877 = vand.u32 %v1876, 4294901760
    %1878 = vmatpush1.xpose.msra.mxu0 %v1877
    %1879 = vmatprep.subr.mxu0 0.0
    %v1880 = vand.u32 %v1388, 4294901760
    %v1881 = vsub.f32 %v1388, %v1880
    %v1882 = vand.u32 %v1881, 4294901760
    %1883 = vmatpush1.xpose.msra.mxu0 %v1882
    %1884 = vmatprep.subr.mxu0 0.0
    %v1885 = vand.u32 %v1389, 4294901760
    %v1886 = vsub.f32 %v1389, %v1885
    %v1887 = vand.u32 %v1886, 4294901760
    %1888 = vmatpush1.xpose.msra.mxu0 %v1887
    %1889 = vmatprep.subr.mxu0 0.0
    %v1890 = vand.u32 %v1390, 4294901760
    %v1891 = vsub.f32 %v1390, %v1890
    %v1892 = vand.u32 %v1891, 4294901760
    %1893 = vmatpush1.xpose.msra.mxu0 %v1892
    %1894 = vmatprep.subr.mxu0 0.0
    %v1895 = vand.u32 %v1391, 4294901760
    %v1896 = vsub.f32 %v1391, %v1895
    %v1897 = vand.u32 %v1896, 4294901760
    %1898 = vmatpush1.xpose.msra.mxu0 %v1897
    %1899 = vmatprep.subr.mxu0 0.0
    %v1900 = vand.u32 %v1392, 4294901760
    %v1901 = vsub.f32 %v1392, %v1900
    %v1902 = vand.u32 %v1901, 4294901760
    %1903 = vmatpush1.xpose.msra.mxu0 %v1902
    %1904 = vmatprep.subr.mxu0 0.0
    %v1905 = vand.u32 %v1393, 4294901760
    %v1906 = vsub.f32 %v1393, %v1905
    %v1907 = vand.u32 %v1906, 4294901760
    %1908 = vmatpush1.xpose.msra.mxu0 %v1907
    %1909 = vmatprep.subr.mxu0 0.0
    %1910 = vmatpush1.xpose.msra.mxu0 0.0
    %1911 = vmatprep.subr.mxu0 0.0
    %1912 = vmatpush1.xpose.msra.mxu0 0.0
    %1913 = vmatprep.subr.mxu0 0.0
    %1914 = vmatpush1.xpose.msra.mxu0 0.0
    %1915 = vmatprep.subr.mxu0 0.0
    %1916 = vmatpush1.xpose.msra.mxu0 0.0
    %1917 = vmatprep.subr.mxu0 0.0
    %1918 = vmatpush1.xpose.msra.mxu0 0.0
    %1919 = vmatprep.subr.mxu0 0.0
    %1920 = vmatpush1.xpose.msra.mxu0 0.0
    %1921 = vmatprep.subr.mxu0 0.0
    %1922 = vmatpush1.xpose.msra.mxu0 0.0
    %1923 = vmatprep.subr.mxu0 0.0
    %1924 = vmatpush1.xpose.msra.mxu0 0.0
    %1925 = vmatprep.subr.mxu0 0.0
    %1926 = vmatpush1.xpose.msra.mxu0 0.0
    %1927 = vmatprep.subr.mxu0 0.0
    %1928 = vmatpush1.xpose.msra.mxu0 0.0
    %1929 = vmatprep.subr.mxu0 0.0
    %1930 = vmatpush1.xpose.msra.mxu0 0.0
    %1931 = vmatprep.subr.mxu0 0.0
    %1932 = vmatpush1.xpose.msra.mxu0 0.0
    %1933 = vmatprep.subr.mxu0 0.0
    %1934 = vmatpush1.xpose.msra.mxu0 0.0
    %1935 = vmatprep.subr.mxu0 0.0
    %1936 = vmatpush1.xpose.msra.mxu0 0.0
    %1937 = vmatprep.subr.mxu0 0.0
    %1938 = vmatpush1.xpose.msra.mxu0 0.0
    %1939 = vmatprep.subr.mxu0 0.0
    %1940 = vmatpush1.xpose.msra.mxu0 0.0
    %1941 = vmatprep.mubr.f32.mxu0 0.0
    %v1942 = vand.u32 %v63, 4294901760
    %1943 = vmatmul.mubr.f32.gmra.mrb[0].mxu0 %v1942
    %v1944 = vpop.f32.mrb[0].mxu0
    %v1945 = vadd.f32 %v1826, %v1944
    %v1946 = vpop.f32.mrb[0].mxu0
    %1947 = vdwg.mxu0
    %1948 = vmatprep.subr.mxu0 0.0
    %v1949 = vand.u32 %v1378, 4294901760
    %1950 = vmatpush1.xpose.msra.mxu0 %v1949
    %1951 = vmatprep.subr.mxu0 0.0
    %v1952 = vand.u32 %v1379, 4294901760
    %1953 = vmatpush1.xpose.msra.mxu0 %v1952
    %1954 = vmatprep.subr.mxu0 0.0
    %v1955 = vand.u32 %v1380, 4294901760
    %1956 = vmatpush1.xpose.msra.mxu0 %v1955
    %1957 = vmatprep.subr.mxu0 0.0
    %v1958 = vand.u32 %v1381, 4294901760
    %1959 = vmatpush1.xpose.msra.mxu0 %v1958
    %1960 = vmatprep.subr.mxu0 0.0
    %v1961 = vand.u32 %v1382, 4294901760
    %1962 = vmatpush1.xpose.msra.mxu0 %v1961
    %1963 = vmatprep.subr.mxu0 0.0
    %v1964 = vand.u32 %v1383, 4294901760
    %1965 = vmatpush1.xpose.msra.mxu0 %v1964
    %1966 = vmatprep.subr.mxu0 0.0
    %v1967 = vand.u32 %v1384, 4294901760
    %1968 = vmatpush1.xpose.msra.mxu0 %v1967
    %1969 = vmatprep.subr.mxu0 0.0
    %v1970 = vand.u32 %v1385, 4294901760
    %1971 = vmatpush1.xpose.msra.mxu0 %v1970
    %1972 = vmatprep.subr.mxu0 0.0
    %v1973 = vand.u32 %v1386, 4294901760
    %1974 = vmatpush1.xpose.msra.mxu0 %v1973
    %1975 = vmatprep.subr.mxu0 0.0
    %v1976 = vand.u32 %v1387, 4294901760
    %1977 = vmatpush1.xpose.msra.mxu0 %v1976
    %1978 = vmatprep.subr.mxu0 0.0
    %v1979 = vand.u32 %v1388, 4294901760
    %1980 = vmatpush1.xpose.msra.mxu0 %v1979
    %1981 = vmatprep.subr.mxu0 0.0
    %v1982 = vand.u32 %v1389, 4294901760
    %1983 = vmatpush1.xpose.msra.mxu0 %v1982
    %1984 = vmatprep.subr.mxu0 0.0
    %v1985 = vand.u32 %v1390, 4294901760
    %1986 = vmatpush1.xpose.msra.mxu0 %v1985
    %1987 = vmatprep.subr.mxu0 0.0
    %v1988 = vand.u32 %v1391, 4294901760
    %1989 = vmatpush1.xpose.msra.mxu0 %v1988
    %1990 = vmatprep.subr.mxu0 0.0
    %v1991 = vand.u32 %v1392, 4294901760
    %1992 = vmatpush1.xpose.msra.mxu0 %v1991
    %1993 = vmatprep.subr.mxu0 0.0
    %v1994 = vand.u32 %v1393, 4294901760
    %1995 = vmatpush1.xpose.msra.mxu0 %v1994
    %1996 = vmatprep.subr.mxu0 0.0
    %1997 = vmatpush1.xpose.msra.mxu0 0.0
    %1998 = vmatprep.subr.mxu0 0.0
    %1999 = vmatpush1.xpose.msra.mxu0 0.0
    %2000 = vmatprep.subr.mxu0 0.0
    %2001 = vmatpush1.xpose.msra.mxu0 0.0
    %2002 = vmatprep.subr.mxu0 0.0
    %2003 = vmatpush1.xpose.msra.mxu0 0.0
    %2004 = vmatprep.subr.mxu0 0.0
    %2005 = vmatpush1.xpose.msra.mxu0 0.0
    %2006 = vmatprep.subr.mxu0 0.0
    %2007 = vmatpush1.xpose.msra.mxu0 0.0
    %2008 = vmatprep.subr.mxu0 0.0
    %2009 = vmatpush1.xpose.msra.mxu0 0.0
    %2010 = vmatprep.subr.mxu0 0.0
    %2011 = vmatpush1.xpose.msra.mxu0 0.0
    %2012 = vmatprep.subr.mxu0 0.0
    %2013 = vmatpush1.xpose.msra.mxu0 0.0
    %2014 = vmatprep.subr.mxu0 0.0
    %2015 = vmatpush1.xpose.msra.mxu0 0.0
    %2016 = vmatprep.subr.mxu0 0.0
    %2017 = vmatpush1.xpose.msra.mxu0 0.0
    %2018 = vmatprep.subr.mxu0 0.0
    %2019 = vmatpush1.xpose.msra.mxu0 0.0
    %2020 = vmatprep.subr.mxu0 0.0
    %2021 = vmatpush1.xpose.msra.mxu0 0.0
    %2022 = vmatprep.subr.mxu0 0.0
    %2023 = vmatpush1.xpose.msra.mxu0 0.0
    %2024 = vmatprep.subr.mxu0 0.0
    %2025 = vmatpush1.xpose.msra.mxu0 0.0
    %2026 = vmatprep.subr.mxu0 0.0
    %2027 = vmatpush1.xpose.msra.mxu0 0.0
    %2028 = vmatprep.mubr.f32.mxu0 0.0
    %v2029 = vand.u32 %v63, 4294901760
    %2030 = vmatmul.mubr.f32.gmra.mrb[0].mxu0 %v2029
    %v2031 = vpop.f32.mrb[0].mxu0
    %v2032 = vadd.f32 %v1945, %v2031
    %v2033 = vpop.f32.mrb[0].mxu0
    %2034 = vdwg.mxu0
    %v2035 = vmax.f32 %v1375, 1e-16
    %v2036 = vmax.f32 %v2032, 1e-16
    %v2037 = vmul.f32 %v2035, %v2036
    %v2038 = vrsqrt.pop %v2037
    %v2039 = vmul.f32 %v718, %v2038
    %s2040 = sld [smem:[#allocation2]]
    %v2041 = vstv %s2040
    %v2042 = vmul.f32 %v2039, %v2041
    %2043 = vst [vmem:[#allocation6] sm:$0xf] %v2042
    // Predicated region
    $region22: #{tpu_custom_call.1} parent=1 // pred_check
      _
    $region23: #{tpu_custom_call.1} parent=1 // pred_check_branch
      %2045 = sbr.rel (0) target = $region25
    $region24: #{tpu_custom_call.1} parent=1 // pred_region
      %s2047 = ssub.s32 64, 64
      %2048 = vsyncadd [#allocation5], %s2047
      %s2050 = sshll.u32 [#allocation6], 4
      %s2051 = int_to_ptr.vmem [resolvable:$true] %s2050
      %2053 = dma.vmem_to_hbm [thread:$0]  %s2051, 64, %s4, [#allocation5]
    $region25: #{tpu_custom_call.1} parent=1 // pred_fallthru
      _
    // Predicated region
    $region26: #{tpu_custom_call.1} parent=1 // pred_check
      _
    $region27: #{tpu_custom_call.1} parent=1 // pred_check_branch
      %2055 = sbr.rel (0) target = $region29
    $region28: #{tpu_custom_call.1} parent=1 // pred_region
      %2056 = dma.done [#allocation5], 64
    $region29: #{tpu_custom_call.1} parent=1 // pred_fallthru
      _
    %2057 = vsyncpa [#allocation4], 1
    %2058 = vsyncpa [#allocation5], 1

</llo_original>
